<compile_context>
chip_gen: v6e
topology: v6e:2x2x1
jax: 0.10.0
libtpu: 0.0.40
codegen_flags: <defaults>
</compile_context>

<pallas_src>
import functools

import jax
import jax.numpy as jnp
from jax.experimental import pallas as pl
from jax.experimental.pallas import tpu as pltpu


# ----------------------------------------------------------------------------
# Generation-aware grid sizing
# ----------------------------------------------------------------------------
def _num_tensorcores() -> int:
    """2 on v7x (dual-TensorCore chips), 1 on v5e/v6e; safe fallback = 1."""
    try:
        kind = jax.devices()[0].device_kind.lower()
    except Exception:
        return 1
    if "v7" in kind or "7x" in kind:
        return 2
    return 1


def _column_blocks(tf: int) -> int:
    n = _num_tensorcores()
    if n >= 2 and tf % (128 * n) == 0:
        return n          # one 128-aligned tile per TensorCore, never more
    return 1              # single full-width lane-dense tile on v5e/v6e


# ----------------------------------------------------------------------------
# Trainable path kernel: y = relu(x @ W_big + b_big), lane-dense (B, T*F) slab
# ----------------------------------------------------------------------------
def _upsample_kernel(x_ref, w_ref, b_ref, o_ref, *, apply_relu: bool):
    # bf16 x bf16 on the MXU, f32 accumulation.
    y = jnp.dot(x_ref[...], w_ref[...], preferred_element_type=jnp.float32)
    y = y + b_ref[...].astype(jnp.float32)        # epilogue stays f32 (v5e-safe)
    if apply_relu:
        y = jnp.maximum(y, 0.0)
    o_ref[...] = y.astype(o_ref.dtype)


def _fused_upsample_call(x, w_big, b_big, *, apply_relu: bool, out_dtype):
    """x: (B, C), w_big: (C, T*F), b_big: (1, T*F) -> (B, T*F) lane-dense."""
    B, C = x.shape
    TF = w_big.shape[1]
    col_blocks = _column_blocks(TF)
    tile = TF // col_blocks

    return pl.pallas_call(
        functools.partial(_upsample_kernel, apply_relu=apply_relu),
        out_shape=jax.ShapeDtypeStruct((B, TF), out_dtype),
        grid=(col_blocks,),
        in_specs=[
            pl.BlockSpec((B, C), lambda j: (0, 0)),       # x (replicated)
            pl.BlockSpec((C, tile), lambda j: (0, j)),    # weight column tile
            pl.BlockSpec((1, tile), lambda j: (0, j)),    # bias column tile
        ],
        out_specs=pl.BlockSpec((B, tile), lambda j: (0, j)),
        compiler_params=pltpu.CompilerParams(
            dimension_semantics=("parallel",)),
    )(x, w_big, b_big)


# ----------------------------------------------------------------------------
# One-time parameter preparation (do NOT call per forward)
# ----------------------------------------------------------------------------
def init_trainable_params(weight, bias, *, out_t_size, out_f_size,
                          param_dtype=jnp.bfloat16):
    """Flatten ConvTranspose1d params once, at init / param-update time.

    weight: (inp_size, out_f_size, out_t_size)  (PyTorch ConvTranspose1d layout)
    bias:   (out_f_size,)
    Returns cached (w_big: (C, T*F), b_big: (1, T*F)) in `param_dtype`.
    """
    C = weight.shape[0]
    TF = out_t_size * out_f_size
    # W_big[i, t*F + f] = weight[i, f, t]  -> matches permute(0, 2, 1) layout.
    w_big = jnp.transpose(weight, (0, 2, 1)).reshape(C, TF).astype(param_dtype)
    b_big = jnp.tile(bias, (out_t_size,)).reshape(1, TF).astype(param_dtype)
    return w_big, b_big


# ----------------------------------------------------------------------------
# Public forward wrappers
# ----------------------------------------------------------------------------
@functools.partial(jax.jit, static_argnames=("out_t_size", "out_f_size"))
def predictions_upsampler_trainable(x, w_big, b_big, *, out_t_size, out_f_size):
    """trainable=True path. x: (B, inp_size); cached w_big/b_big from
    init_trainable_params. Returns (B, out_t_size, out_f_size)."""
    B = x.shape[0]
    y2d = _fused_upsample_call(x.astype(w_big.dtype), w_big, b_big,
                               apply_relu=True, out_dtype=x.dtype)
    return y2d.reshape(B, out_t_size, out_f_size)


def _nearest_upsample_kernel(x_ref, sel_ref, o_ref):
    # y[b, f] = x[b, floor(f*C/F)] via one (C, F) one-hot MXU matmul,
    # then a sublane broadcast across T (no T-tiled weight streamed from HBM).
    y = jnp.dot(x_ref[...], sel_ref[...], preferred_element_type=jnp.float32)
    o_ref[...] = jnp.broadcast_to(y[:, None, :], o_ref.shape).astype(o_ref.dtype)


@functools.partial(jax.jit, static_argnames=("out_t_size", "out_f_size"))
def predictions_upsampler_nontrainable(x, *, out_t_size, out_f_size):
    """trainable=False path: two nearest-neighbor Upsamples + permute."""
    B, C = x.shape
    src = (jnp.arange(out_f_size) * C) // out_f_size                 # nearest idx
    sel = (src[None, :] == jnp.arange(C)[:, None]).astype(x.dtype)   # (C, F) one-hot

    return pl.pallas_call(
        _nearest_upsample_kernel,
        out_shape=jax.ShapeDtypeStruct((B, out_t_size, out_f_size), x.dtype),
        grid=(1,),
        in_specs=[
            pl.BlockSpec((B, C), lambda i: (0, 0)),
            pl.BlockSpec((C, out_f_size), lambda i: (0, 0)),
        ],
        out_specs=pl.BlockSpec((B, out_t_size, out_f_size), lambda i: (0, 0, 0)),
        compiler_params=pltpu.CompilerParams(
            dimension_semantics=("arbitrary",)),
    )(x, sel)


# ----------------------------------------------------------------------------
# Demo / self-check
# ----------------------------------------------------------------------------
if __name__ == "__main__":
    B, INP, T, F = 2, 10, 20, 512   # module defaults: inp=10, out_t=20, out_f=512
    key = jax.random.PRNGKey(0)
    kx, kw, kb = jax.random.split(key, 3)
    x = jax.random.normal(kx, (B, INP), jnp.float32)
    # ConvTranspose1d weight layout: (in_channels, out_channels, kernel_size)
    weight = jax.random.normal(kw, (INP, F, T), jnp.float32) * 0.05
    bias = jax.random.normal(kb, (F,), jnp.float32) * 0.05

    # One-time param prep (analogous to module __init__) -- NOT per forward.
    w_big, b_big = init_trainable_params(weight, bias,
                                         out_t_size=T, out_f_size=F)

    # trainable=True (default) path
    out = predictions_upsampler_trainable(x, w_big, b_big,
                                          out_t_size=T, out_f_size=F)
    out = jax.block_until_ready(out)
    assert out.shape == (B, T, F)

    # pure-JAX reference: ConvTranspose1d on length-1 input + ReLU + permute(0,2,1)
    ref = jnp.maximum(
        jnp.einsum("bi,ift->btf", x, weight,
                   preferred_element_type=jnp.float32)
        + bias[None, None, :], 0.0)
    assert jnp.allclose(out, ref, atol=5e-2, rtol=5e-2)

    # trainable=False path (nearest-neighbor upsampling)
    out_nt = predictions_upsampler_nontrainable(x, out_t_size=T, out_f_size=F)
    out_nt = jax.block_until_ready(out_nt)
    assert out_nt.shape == (B, T, F)
    src = (jnp.arange(F) * INP) // F
    ref_nt = jnp.broadcast_to(x[:, src][:, None, :], (B, T, F))
    assert jnp.allclose(out_nt, ref_nt, atol=5e-2, rtol=5e-2)

    print("KERNEL_OK")
</pallas_src>

<mosaic_0001>
module attributes {stable_mosaic.version = 11 : i64} {
  func.func @_upsample_kernel(%arg0: i32, %arg1: memref<2x10xbf16, #tpu.memory_space<vmem>>, %arg2: memref<10x10240xbf16, #tpu.memory_space<vmem>>, %arg3: memref<1x10240xbf16, #tpu.memory_space<vmem>>, %arg4: memref<2x10240xf32, #tpu.memory_space<vmem>>) attributes {dimension_semantics = [#tpu.dimension_semantics<parallel>], iteration_bounds = array<i64: 1>, scalar_prefetch = 0 : i64, scratch_operands = 0 : i64, tpu.core_type = #tpu.core_type<tc>, window_params = [{pipeline_mode = #tpu.pipeline_mode<synchronous>, transform_indices = @transform_0, window_bounds = array<i64: 2, 10>}, {transform_indices = @transform_1, window_bounds = array<i64: 10, 10240>}, {transform_indices = @transform_2, window_bounds = array<i64: 1, 10240>}, {transform_indices = @transform_3, window_bounds = array<i64: 2, 10240>}]} {
    %c0 = arith.constant 0 : index
    %c0_0 = arith.constant 0 : index
    %0 = vector.load %arg1[%c0, %c0_0] : memref<2x10xbf16, #tpu.memory_space<vmem>>, vector<2x10xbf16>
    %c0_1 = arith.constant 0 : index
    %c0_2 = arith.constant 0 : index
    %1 = vector.load %arg2[%c0_1, %c0_2] : memref<10x10240xbf16, #tpu.memory_space<vmem>>, vector<10x10240xbf16>
    %cst = arith.constant dense<0.000000e+00> : vector<2x10240xf32>
    %2 = tpu.matmul %0, %1, %cst {dimension_numbers = #tpu.dot_dimension_numbers<[1], [0], [0], [1], [0, 0, 1, 1], [], []>} : vector<2x10xbf16>, vector<10x10240xbf16>, vector<2x10240xf32> -> vector<2x10240xf32>
    %c0_3 = arith.constant 0 : index
    %c0_4 = arith.constant 0 : index
    %3 = vector.load %arg3[%c0_3, %c0_4] : memref<1x10240xbf16, #tpu.memory_space<vmem>>, vector<1x10240xbf16>
    %4 = arith.extf %3 : vector<1x10240xbf16> to vector<1x10240xf32>
    %5 = vector.broadcast %4 : vector<1x10240xf32> to vector<2x10240xf32>
    %6 = arith.addf %2, %5 : vector<2x10240xf32>
    %cst_5 = arith.constant 0.000000e+00 : f32
    %7 = vector.broadcast %cst_5 : f32 to vector<2x10240xf32>
    %8 = arith.maximumf %6, %7 : vector<2x10240xf32>
    %c0_6 = arith.constant 0 : index
    %c0_7 = arith.constant 0 : index
    %9 = vector.load %arg4[%c0_6, %c0_7] : memref<2x10240xf32, #tpu.memory_space<vmem>>, vector<2x10240xf32>
    tpu.vector_store %arg4[%c0_6, %c0_7], %8 {strides = array<i32>} : memref<2x10240xf32, #tpu.memory_space<vmem>>, vector<2x10240xf32>,
    return
  }
  func.func @transform_0(%arg0: i32) -> (i32, i32) {
    %c0_i32 = arith.constant 0 : i32
    %c0_i32_0 = arith.constant 0 : i32
    %c0_i32_1 = arith.constant 0 : i32
    return %c0_i32, %c0_i32_0 : i32, i32
  }
  func.func @transform_1(%arg0: i32) -> (i32, i32) {
    %c0_i32 = arith.constant 0 : i32
    %c0_i32_0 = arith.constant 0 : i32
    return %c0_i32, %arg0 : i32, i32
  }
  func.func @transform_2(%arg0: i32) -> (i32, i32) {
    %c0_i32 = arith.constant 0 : i32
    %c0_i32_0 = arith.constant 0 : i32
    return %c0_i32, %arg0 : i32, i32
  }
  func.func @transform_3(%arg0: i32) -> (i32, i32) {
    %c0_i32 = arith.constant 0 : i32
    %c0_i32_0 = arith.constant 0 : i32
    return %c0_i32, %arg0 : i32, i32
  }
}

</mosaic_0001>

<llo_original>
// kernel: predictions_upsampler_trainable.1
$region0: #{predictions_upsampler_trainable.1}
  #allocation0 [shape = 'u32[]', space=smem, size = 0x4, offset = 0x4, fixed_abs, tag = 'smem constant byte address 0x4 - core index']
  #allocation1 [shape = 'u32[144,128]{1,0:T(1,128)}', space=vmem, size = 0x12000, scoped, tag = 'internal scratch']
  %s0 = inlined_call_operand.vmem [shape: bf16[2,10], index: 0, kind: input, shape index: {}]
  %s1 = inlined_call_operand.hbm [shape: bf16[10,10240], index: 1, kind: input, shape index: {}]
  %s2 = inlined_call_operand.hbm [shape: bf16[1,10240], index: 2, kind: input, shape index: {}]
  %s3 = inlined_call_operand.hbm [shape: f32[2,10240], index: 3, kind: output, shape index: {}]
  %s4 = sld [smem:[#allocation0]]
  $region30: #{predictions_upsampler_trainable.1} parent=0
    _
  %s6 = ssub.s32 1, %s4
  %s7 = scalar_select 0, %s6, %s4
  $region1: #{predictions_upsampler_trainable.1} parent=0
    #allocation2 [shape = 'u8[327680]{0}', space=vmem, size = 0x50000, scoped, tag = 'input window, operand 1, single buffered']
    #allocation3 [shape = 's32[1]{0}', space=sflag, size = 0x4, scoped, tag = 'scoped memory for predictions_upsampler_trainable.1']
    #allocation4 [shape = 's32[1]{0}', space=sflag, size = 0x4, scoped, tag = 'scoped memory for predictions_upsampler_trainable.1']
    #allocation5 [shape = 'u8[40960]{0}', space=vmem, size = 0xa000, scoped, tag = 'input window, operand 2, single buffered']
    #allocation6 [shape = 's32[1]{0}', space=sflag, size = 0x4, scoped, tag = 'scoped memory for predictions_upsampler_trainable.1']
    #allocation7 [shape = 'u8[81920]{0}', space=vmem, size = 0x14000, scoped, tag = 'output window, operand 0, single buffered']
    %8 = vsyncpa [#allocation3], 0
    %9 = vsyncpa [#allocation6], 0
    %10 = vsyncpa [#allocation4], 0
    // Predicated region
    $region2: #{predictions_upsampler_trainable.1} parent=1 // pred_check
      _
    $region3: #{predictions_upsampler_trainable.1} parent=1 // pred_check_branch
      %12 = sbr.rel (0) target = $region5
    $region4: #{predictions_upsampler_trainable.1} parent=1 // pred_region
      _
    $region5: #{predictions_upsampler_trainable.1} parent=1 // pred_fallthru
      _
    // Predicated region
    $region6: #{predictions_upsampler_trainable.1} parent=1 // pred_check
      _
    $region7: #{predictions_upsampler_trainable.1} parent=1 // pred_check_branch
      %14 = sbr.rel (0) target = $region9
    $region8: #{predictions_upsampler_trainable.1} parent=1 // pred_region
      %s16 = ssub.s32 10240, 10240
      %17 = vsyncadd [#allocation3], %s16
      %s18 = sshll.u32 [#allocation2], 4
      %s19 = int_to_ptr.vmem [resolvable:$true] %s18
      %24 = dma.hbm_to_vmem [thread:$0]  %s1, 10240, %s19, [#allocation3], 5120, 5120, 320
    $region9: #{predictions_upsampler_trainable.1} parent=1 // pred_fallthru
      _
    // Predicated region
    $region10: #{predictions_upsampler_trainable.1} parent=1 // pred_check
      _
    $region11: #{predictions_upsampler_trainable.1} parent=1 // pred_check_branch
      %26 = sbr.rel (0) target = $region13
    $region12: #{predictions_upsampler_trainable.1} parent=1 // pred_region
      %s28 = ssub.s32 1280, 1280
      %29 = vsyncadd [#allocation6], %s28
      %s31 = sshll.u32 [#allocation5], 4
      %s32 = int_to_ptr.vmem [resolvable:$true] %s31
      %34 = dma.hbm_to_vmem [thread:$0]  %s2, 1280, %s32, [#allocation6]
    $region13: #{predictions_upsampler_trainable.1} parent=1 // pred_fallthru
      _
    // Predicated region
    $region14: #{predictions_upsampler_trainable.1} parent=1 // pred_check
      _
    $region15: #{predictions_upsampler_trainable.1} parent=1 // pred_check_branch
      %36 = sbr.rel (0) target = $region17
    $region16: #{predictions_upsampler_trainable.1} parent=1 // pred_region
      %37 = dma.done [#allocation3], 10240
    $region17: #{predictions_upsampler_trainable.1} parent=1 // pred_fallthru
      _
    // Predicated region
    $region18: #{predictions_upsampler_trainable.1} parent=1 // pred_check
      _
    $region19: #{predictions_upsampler_trainable.1} parent=1 // pred_check_branch
      %39 = sbr.rel (0) target = $region21
    $region20: #{predictions_upsampler_trainable.1} parent=1 // pred_region
      %40 = dma.done [#allocation6], 1280
    $region21: #{predictions_upsampler_trainable.1} parent=1 // pred_fallthru
      _
    %v42 = vld [vmem:[%s0] sm:$0x1]
    %v43 = vld [vmem:[#allocation2] sm:$0xff]
    %v44 = vld [vmem:[#allocation2 + $0x8] sm:$0xff]
    %v45 = vld [vmem:[#allocation2 + $0x10] sm:$0xff]
    %v46 = vld [vmem:[#allocation2 + $0x18] sm:$0xff]
    %v47 = vld [vmem:[#allocation2 + $0x20] sm:$0xff]
    %v48 = vld [vmem:[#allocation2 + $0x28] sm:$0xff]
    %v49 = vld [vmem:[#allocation2 + $0x30] sm:$0xff]
    %v50 = vld [vmem:[#allocation2 + $0x38] sm:$0xff]
    %v51 = vld [vmem:[#allocation2 + $0x40] sm:$0xff]
    %v52 = vld [vmem:[#allocation2 + $0x48] sm:$0xff]
    %v53 = vld [vmem:[#allocation2 + $0x50] sm:$0xff]
    %v54 = vld [vmem:[#allocation2 + $0x58] sm:$0xff]
    %v55 = vld [vmem:[#allocation2 + $0x60] sm:$0xff]
    %v56 = vld [vmem:[#allocation2 + $0x68] sm:$0xff]
    %v57 = vld [vmem:[#allocation2 + $0x70] sm:$0xff]
    %v58 = vld [vmem:[#allocation2 + $0x78] sm:$0xff]
    %v59 = vld [vmem:[#allocation2 + $0x80] sm:$0xff]
    %v60 = vld [vmem:[#allocation2 + $0x88] sm:$0xff]
    %v61 = vld [vmem:[#allocation2 + $0x90] sm:$0xff]
    %v62 = vld [vmem:[#allocation2 + $0x98] sm:$0xff]
    %v63 = vld [vmem:[#allocation2 + $0xa0] sm:$0xff]
    %v64 = vld [vmem:[#allocation2 + $0xa8] sm:$0xff]
    %v65 = vld [vmem:[#allocation2 + $0xb0] sm:$0xff]
    %v66 = vld [vmem:[#allocation2 + $0xb8] sm:$0xff]
    %v67 = vld [vmem:[#allocation2 + $0xc0] sm:$0xff]
    %v68 = vld [vmem:[#allocation2 + $0xc8] sm:$0xff]
    %v69 = vld [vmem:[#allocation2 + $0xd0] sm:$0xff]
    %v70 = vld [vmem:[#allocation2 + $0xd8] sm:$0xff]
    %v71 = vld [vmem:[#allocation2 + $0xe0] sm:$0xff]
    %v72 = vld [vmem:[#allocation2 + $0xe8] sm:$0xff]
    %v73 = vld [vmem:[#allocation2 + $0xf0] sm:$0xff]
    %v74 = vld [vmem:[#allocation2 + $0xf8] sm:$0xff]
    %v75 = vld [vmem:[#allocation2 + $0x100] sm:$0xff]
    %v76 = vld [vmem:[#allocation2 + $0x108] sm:$0xff]
    %v77 = vld [vmem:[#allocation2 + $0x110] sm:$0xff]
    %v78 = vld [vmem:[#allocation2 + $0x118] sm:$0xff]
    %v79 = vld [vmem:[#allocation2 + $0x120] sm:$0xff]
    %v80 = vld [vmem:[#allocation2 + $0x128] sm:$0xff]
    %v81 = vld [vmem:[#allocation2 + $0x130] sm:$0xff]
    %v82 = vld [vmem:[#allocation2 + $0x138] sm:$0xff]
    %v83 = vld [vmem:[#allocation2 + $0x140] sm:$0x11]
    %v84 = vld [vmem:[#allocation2 + $0x148] sm:$0x11]
    %v85 = vld [vmem:[#allocation2 + $0x150] sm:$0x11]
    %v86 = vld [vmem:[#allocation2 + $0x158] sm:$0x11]
    %v87 = vld [vmem:[#allocation2 + $0x160] sm:$0x11]
    %v88 = vld [vmem:[#allocation2 + $0x168] sm:$0x11]
    %v89 = vld [vmem:[#allocation2 + $0x170] sm:$0x11]
    %v90 = vld [vmem:[#allocation2 + $0x178] sm:$0x11]
    %v91 = vld [vmem:[#allocation2 + $0x180] sm:$0x11]
    %v92 = vld [vmem:[#allocation2 + $0x188] sm:$0x11]
    %v93 = vld [vmem:[#allocation2 + $0x190] sm:$0x11]
    %v94 = vld [vmem:[#allocation2 + $0x198] sm:$0x11]
    %v95 = vld [vmem:[#allocation2 + $0x1a0] sm:$0x11]
    %v96 = vld [vmem:[#allocation2 + $0x1a8] sm:$0x11]
    %v97 = vld [vmem:[#allocation2 + $0x1b0] sm:$0x11]
    %v98 = vld [vmem:[#allocation2 + $0x1b8] sm:$0x11]
    %v99 = vld [vmem:[#allocation2 + $0x1c0] sm:$0x11]
    %v100 = vld [vmem:[#allocation2 + $0x1c8] sm:$0x11]
    %v101 = vld [vmem:[#allocation2 + $0x1d0] sm:$0x11]
    %v102 = vld [vmem:[#allocation2 + $0x1d8] sm:$0x11]
    %v103 = vld [vmem:[#allocation2 + $0x1e0] sm:$0x11]
    %v104 = vld [vmem:[#allocation2 + $0x1e8] sm:$0x11]
    %v105 = vld [vmem:[#allocation2 + $0x1f0] sm:$0x11]
    %v106 = vld [vmem:[#allocation2 + $0x1f8] sm:$0x11]
    %v107 = vld [vmem:[#allocation2 + $0x200] sm:$0x11]
    %v108 = vld [vmem:[#allocation2 + $0x208] sm:$0x11]
    %v109 = vld [vmem:[#allocation2 + $0x210] sm:$0x11]
    %v110 = vld [vmem:[#allocation2 + $0x218] sm:$0x11]
    %v111 = vld [vmem:[#allocation2 + $0x220] sm:$0x11]
    %v112 = vld [vmem:[#allocation2 + $0x228] sm:$0x11]
    %v113 = vld [vmem:[#allocation2 + $0x230] sm:$0x11]
    %v114 = vld [vmem:[#allocation2 + $0x238] sm:$0x11]
    %v115 = vld [vmem:[#allocation2 + $0x240] sm:$0x11]
    %v116 = vld [vmem:[#allocation2 + $0x248] sm:$0x11]
    %v117 = vld [vmem:[#allocation2 + $0x250] sm:$0x11]
    %v118 = vld [vmem:[#allocation2 + $0x258] sm:$0x11]
    %v119 = vld [vmem:[#allocation2 + $0x260] sm:$0x11]
    %v120 = vld [vmem:[#allocation2 + $0x268] sm:$0x11]
    %v121 = vld [vmem:[#allocation2 + $0x270] sm:$0x11]
    %v122 = vld [vmem:[#allocation2 + $0x278] sm:$0x11]
    %v123 = vld [vmem:[#allocation5] sm:$0xff]
    %v124 = vld [vmem:[#allocation5 + $0x8] sm:$0xff]
    %v125 = vld [vmem:[#allocation5 + $0x10] sm:$0xff]
    %v126 = vld [vmem:[#allocation5 + $0x18] sm:$0xff]
    %v127 = vld [vmem:[#allocation5 + $0x20] sm:$0xff]
    %v128 = vld [vmem:[#allocation5 + $0x28] sm:$0xff]
    %v129 = vld [vmem:[#allocation5 + $0x30] sm:$0xff]
    %v130 = vld [vmem:[#allocation5 + $0x38] sm:$0xff]
    %v131 = vld [vmem:[#allocation5 + $0x40] sm:$0xff]
    %v132 = vld [vmem:[#allocation5 + $0x48] sm:$0xff]
    %v133 = vunpack.c.l.bf16 %v123
    %v134 = vunpack.c.h.bf16 %v123
    %v135 = vunpack.c.l.bf16 %v124
    %v136 = vunpack.c.h.bf16 %v124
    %v137 = vunpack.c.l.bf16 %v125
    %v138 = vunpack.c.h.bf16 %v125
    %v139 = vunpack.c.l.bf16 %v126
    %v140 = vunpack.c.h.bf16 %v126
    %v141 = vunpack.c.l.bf16 %v127
    %v142 = vunpack.c.h.bf16 %v127
    %v143 = vunpack.c.l.bf16 %v128
    %v144 = vunpack.c.h.bf16 %v128
    %v145 = vunpack.c.l.bf16 %v129
    %v146 = vunpack.c.h.bf16 %v129
    %v147 = vunpack.c.l.bf16 %v130
    %v148 = vunpack.c.h.bf16 %v130
    %v149 = vunpack.c.l.bf16 %v131
    %v150 = vunpack.c.h.bf16 %v131
    %v151 = vunpack.c.l.bf16 %v132
    %v152 = vunpack.c.h.bf16 %v132
    %v173 = vlaneseq
    %v174 = vshrl.u32 %v173, 7
    %v175 = vsub.s32 0, %v174
    %v176 = vrot.slane %v133, %v175
    %v177 = vlaneseq
    %v178 = vshrl.u32 %v177, 7
    %v179 = vsub.s32 2, %v178
    %v180 = vrot.slane %v133, %v179
    %v181 = vlaneseq
    %v182 = vshrl.u32 %v181, 7
    %v183 = vsub.s32 4, %v182
    %v184 = vrot.slane %v133, %v183
    %v185 = vlaneseq
    %v186 = vshrl.u32 %v185, 7
    %v187 = vsub.s32 6, %v186
    %v188 = vrot.slane %v133, %v187
    %v189 = vlaneseq
    %v190 = vshrl.u32 %v189, 7
    %v191 = vsub.s32 0, %v190
    %v192 = vrot.slane %v134, %v191
    %v193 = vlaneseq
    %v194 = vshrl.u32 %v193, 7
    %v195 = vsub.s32 2, %v194
    %v196 = vrot.slane %v134, %v195
    %v197 = vlaneseq
    %v198 = vshrl.u32 %v197, 7
    %v199 = vsub.s32 4, %v198
    %v200 = vrot.slane %v134, %v199
    %v201 = vlaneseq
    %v202 = vshrl.u32 %v201, 7
    %v203 = vsub.s32 6, %v202
    %v204 = vrot.slane %v134, %v203
    %v205 = vlaneseq
    %v206 = vshrl.u32 %v205, 7
    %v207 = vsub.s32 0, %v206
    %v208 = vrot.slane %v135, %v207
    %v209 = vlaneseq
    %v210 = vshrl.u32 %v209, 7
    %v211 = vsub.s32 2, %v210
    %v212 = vrot.slane %v135, %v211
    %v213 = vlaneseq
    %v214 = vshrl.u32 %v213, 7
    %v215 = vsub.s32 4, %v214
    %v216 = vrot.slane %v135, %v215
    %v217 = vlaneseq
    %v218 = vshrl.u32 %v217, 7
    %v219 = vsub.s32 6, %v218
    %v220 = vrot.slane %v135, %v219
    %v221 = vlaneseq
    %v222 = vshrl.u32 %v221, 7
    %v223 = vsub.s32 0, %v222
    %v224 = vrot.slane %v136, %v223
    %v225 = vlaneseq
    %v226 = vshrl.u32 %v225, 7
    %v227 = vsub.s32 2, %v226
    %v228 = vrot.slane %v136, %v227
    %v229 = vlaneseq
    %v230 = vshrl.u32 %v229, 7
    %v231 = vsub.s32 4, %v230
    %v232 = vrot.slane %v136, %v231
    %v233 = vlaneseq
    %v234 = vshrl.u32 %v233, 7
    %v235 = vsub.s32 6, %v234
    %v236 = vrot.slane %v136, %v235
    %v237 = vlaneseq
    %v238 = vshrl.u32 %v237, 7
    %v239 = vsub.s32 0, %v238
    %v240 = vrot.slane %v137, %v239
    %v241 = vlaneseq
    %v242 = vshrl.u32 %v241, 7
    %v243 = vsub.s32 2, %v242
    %v244 = vrot.slane %v137, %v243
    %v245 = vlaneseq
    %v246 = vshrl.u32 %v245, 7
    %v247 = vsub.s32 4, %v246
    %v248 = vrot.slane %v137, %v247
    %v249 = vlaneseq
    %v250 = vshrl.u32 %v249, 7
    %v251 = vsub.s32 6, %v250
    %v252 = vrot.slane %v137, %v251
    %v253 = vlaneseq
    %v254 = vshrl.u32 %v253, 7
    %v255 = vsub.s32 0, %v254
    %v256 = vrot.slane %v138, %v255
    %v257 = vlaneseq
    %v258 = vshrl.u32 %v257, 7
    %v259 = vsub.s32 2, %v258
    %v260 = vrot.slane %v138, %v259
    %v261 = vlaneseq
    %v262 = vshrl.u32 %v261, 7
    %v263 = vsub.s32 4, %v262
    %v264 = vrot.slane %v138, %v263
    %v265 = vlaneseq
    %v266 = vshrl.u32 %v265, 7
    %v267 = vsub.s32 6, %v266
    %v268 = vrot.slane %v138, %v267
    %v269 = vlaneseq
    %v270 = vshrl.u32 %v269, 7
    %v271 = vsub.s32 0, %v270
    %v272 = vrot.slane %v139, %v271
    %v273 = vlaneseq
    %v274 = vshrl.u32 %v273, 7
    %v275 = vsub.s32 2, %v274
    %v276 = vrot.slane %v139, %v275
    %v277 = vlaneseq
    %v278 = vshrl.u32 %v277, 7
    %v279 = vsub.s32 4, %v278
    %v280 = vrot.slane %v139, %v279
    %v281 = vlaneseq
    %v282 = vshrl.u32 %v281, 7
    %v283 = vsub.s32 6, %v282
    %v284 = vrot.slane %v139, %v283
    %v285 = vlaneseq
    %v286 = vshrl.u32 %v285, 7
    %v287 = vsub.s32 0, %v286
    %v288 = vrot.slane %v140, %v287
    %v289 = vlaneseq
    %v290 = vshrl.u32 %v289, 7
    %v291 = vsub.s32 2, %v290
    %v292 = vrot.slane %v140, %v291
    %v293 = vlaneseq
    %v294 = vshrl.u32 %v293, 7
    %v295 = vsub.s32 4, %v294
    %v296 = vrot.slane %v140, %v295
    %v297 = vlaneseq
    %v298 = vshrl.u32 %v297, 7
    %v299 = vsub.s32 6, %v298
    %v300 = vrot.slane %v140, %v299
    %v301 = vlaneseq
    %v302 = vshrl.u32 %v301, 7
    %v303 = vsub.s32 0, %v302
    %v304 = vrot.slane %v141, %v303
    %v305 = vlaneseq
    %v306 = vshrl.u32 %v305, 7
    %v307 = vsub.s32 2, %v306
    %v308 = vrot.slane %v141, %v307
    %v309 = vlaneseq
    %v310 = vshrl.u32 %v309, 7
    %v311 = vsub.s32 4, %v310
    %v312 = vrot.slane %v141, %v311
    %v313 = vlaneseq
    %v314 = vshrl.u32 %v313, 7
    %v315 = vsub.s32 6, %v314
    %v316 = vrot.slane %v141, %v315
    %v317 = vlaneseq
    %v318 = vshrl.u32 %v317, 7
    %v319 = vsub.s32 0, %v318
    %v320 = vrot.slane %v142, %v319
    %v321 = vlaneseq
    %v322 = vshrl.u32 %v321, 7
    %v323 = vsub.s32 2, %v322
    %v324 = vrot.slane %v142, %v323
    %v325 = vlaneseq
    %v326 = vshrl.u32 %v325, 7
    %v327 = vsub.s32 4, %v326
    %v328 = vrot.slane %v142, %v327
    %v329 = vlaneseq
    %v330 = vshrl.u32 %v329, 7
    %v331 = vsub.s32 6, %v330
    %v332 = vrot.slane %v142, %v331
    %v333 = vlaneseq
    %v334 = vshrl.u32 %v333, 7
    %v335 = vsub.s32 0, %v334
    %v336 = vrot.slane %v143, %v335
    %v337 = vlaneseq
    %v338 = vshrl.u32 %v337, 7
    %v339 = vsub.s32 2, %v338
    %v340 = vrot.slane %v143, %v339
    %v341 = vlaneseq
    %v342 = vshrl.u32 %v341, 7
    %v343 = vsub.s32 4, %v342
    %v344 = vrot.slane %v143, %v343
    %v345 = vlaneseq
    %v346 = vshrl.u32 %v345, 7
    %v347 = vsub.s32 6, %v346
    %v348 = vrot.slane %v143, %v347
    %v349 = vlaneseq
    %v350 = vshrl.u32 %v349, 7
    %v351 = vsub.s32 0, %v350
    %v352 = vrot.slane %v144, %v351
    %v353 = vlaneseq
    %v354 = vshrl.u32 %v353, 7
    %v355 = vsub.s32 2, %v354
    %v356 = vrot.slane %v144, %v355
    %v357 = vlaneseq
    %v358 = vshrl.u32 %v357, 7
    %v359 = vsub.s32 4, %v358
    %v360 = vrot.slane %v144, %v359
    %v361 = vlaneseq
    %v362 = vshrl.u32 %v361, 7
    %v363 = vsub.s32 6, %v362
    %v364 = vrot.slane %v144, %v363
    %v365 = vlaneseq
    %v366 = vshrl.u32 %v365, 7
    %v367 = vsub.s32 0, %v366
    %v368 = vrot.slane %v145, %v367
    %v369 = vlaneseq
    %v370 = vshrl.u32 %v369, 7
    %v371 = vsub.s32 2, %v370
    %v372 = vrot.slane %v145, %v371
    %v373 = vlaneseq
    %v374 = vshrl.u32 %v373, 7
    %v375 = vsub.s32 4, %v374
    %v376 = vrot.slane %v145, %v375
    %v377 = vlaneseq
    %v378 = vshrl.u32 %v377, 7
    %v379 = vsub.s32 6, %v378
    %v380 = vrot.slane %v145, %v379
    %v381 = vlaneseq
    %v382 = vshrl.u32 %v381, 7
    %v383 = vsub.s32 0, %v382
    %v384 = vrot.slane %v146, %v383
    %v385 = vlaneseq
    %v386 = vshrl.u32 %v385, 7
    %v387 = vsub.s32 2, %v386
    %v388 = vrot.slane %v146, %v387
    %v389 = vlaneseq
    %v390 = vshrl.u32 %v389, 7
    %v391 = vsub.s32 4, %v390
    %v392 = vrot.slane %v146, %v391
    %v393 = vlaneseq
    %v394 = vshrl.u32 %v393, 7
    %v395 = vsub.s32 6, %v394
    %v396 = vrot.slane %v146, %v395
    %v397 = vlaneseq
    %v398 = vshrl.u32 %v397, 7
    %v399 = vsub.s32 0, %v398
    %v400 = vrot.slane %v147, %v399
    %v401 = vlaneseq
    %v402 = vshrl.u32 %v401, 7
    %v403 = vsub.s32 2, %v402
    %v404 = vrot.slane %v147, %v403
    %v405 = vlaneseq
    %v406 = vshrl.u32 %v405, 7
    %v407 = vsub.s32 4, %v406
    %v408 = vrot.slane %v147, %v407
    %v409 = vlaneseq
    %v410 = vshrl.u32 %v409, 7
    %v411 = vsub.s32 6, %v410
    %v412 = vrot.slane %v147, %v411
    %v413 = vlaneseq
    %v414 = vshrl.u32 %v413, 7
    %v415 = vsub.s32 0, %v414
    %v416 = vrot.slane %v148, %v415
    %v417 = vlaneseq
    %v418 = vshrl.u32 %v417, 7
    %v419 = vsub.s32 2, %v418
    %v420 = vrot.slane %v148, %v419
    %v421 = vlaneseq
    %v422 = vshrl.u32 %v421, 7
    %v423 = vsub.s32 4, %v422
    %v424 = vrot.slane %v148, %v423
    %v425 = vlaneseq
    %v426 = vshrl.u32 %v425, 7
    %v427 = vsub.s32 6, %v426
    %v428 = vrot.slane %v148, %v427
    %v429 = vlaneseq
    %v430 = vshrl.u32 %v429, 7
    %v431 = vsub.s32 0, %v430
    %v432 = vrot.slane %v149, %v431
    %v433 = vlaneseq
    %v434 = vshrl.u32 %v433, 7
    %v435 = vsub.s32 2, %v434
    %v436 = vrot.slane %v149, %v435
    %v437 = vlaneseq
    %v438 = vshrl.u32 %v437, 7
    %v439 = vsub.s32 4, %v438
    %v440 = vrot.slane %v149, %v439
    %v441 = vlaneseq
    %v442 = vshrl.u32 %v441, 7
    %v443 = vsub.s32 6, %v442
    %v444 = vrot.slane %v149, %v443
    %v445 = vlaneseq
    %v446 = vshrl.u32 %v445, 7
    %v447 = vsub.s32 0, %v446
    %v448 = vrot.slane %v150, %v447
    %v449 = vlaneseq
    %v450 = vshrl.u32 %v449, 7
    %v451 = vsub.s32 2, %v450
    %v452 = vrot.slane %v150, %v451
    %v453 = vlaneseq
    %v454 = vshrl.u32 %v453, 7
    %v455 = vsub.s32 4, %v454
    %v456 = vrot.slane %v150, %v455
    %v457 = vlaneseq
    %v458 = vshrl.u32 %v457, 7
    %v459 = vsub.s32 6, %v458
    %v460 = vrot.slane %v150, %v459
    %v461 = vlaneseq
    %v462 = vshrl.u32 %v461, 7
    %v463 = vsub.s32 0, %v462
    %v464 = vrot.slane %v151, %v463
    %v465 = vlaneseq
    %v466 = vshrl.u32 %v465, 7
    %v467 = vsub.s32 2, %v466
    %v468 = vrot.slane %v151, %v467
    %v469 = vlaneseq
    %v470 = vshrl.u32 %v469, 7
    %v471 = vsub.s32 4, %v470
    %v472 = vrot.slane %v151, %v471
    %v473 = vlaneseq
    %v474 = vshrl.u32 %v473, 7
    %v475 = vsub.s32 6, %v474
    %v476 = vrot.slane %v151, %v475
    %v477 = vlaneseq
    %v478 = vshrl.u32 %v477, 7
    %v479 = vsub.s32 0, %v478
    %v480 = vrot.slane %v152, %v479
    %v481 = vlaneseq
    %v482 = vshrl.u32 %v481, 7
    %v483 = vsub.s32 2, %v482
    %v484 = vrot.slane %v152, %v483
    %v485 = vlaneseq
    %v486 = vshrl.u32 %v485, 7
    %v487 = vsub.s32 4, %v486
    %v488 = vrot.slane %v152, %v487
    %v489 = vlaneseq
    %v490 = vshrl.u32 %v489, 7
    %v491 = vsub.s32 6, %v490
    %v492 = vrot.slane %v152, %v491
    %v573 = vlaneseq
    %v574 = vshrl.u32 %v573, 7
    %v575 = vsub.s32 0, %v574
    %v576 = vrot.slane %v176, %v575
    %v577 = vlaneseq
    %v578 = vshrl.u32 %v577, 7
    %v579 = vsub.s32 0, %v578
    %v580 = vrot.slane %v180, %v579
    %v581 = vlaneseq
    %v582 = vshrl.u32 %v581, 7
    %v583 = vsub.s32 0, %v582
    %v584 = vrot.slane %v184, %v583
    %v585 = vlaneseq
    %v586 = vshrl.u32 %v585, 7
    %v587 = vsub.s32 0, %v586
    %v588 = vrot.slane %v188, %v587
    %v589 = vlaneseq
    %v590 = vshrl.u32 %v589, 7
    %v591 = vsub.s32 0, %v590
    %v592 = vrot.slane %v192, %v591
    %v593 = vlaneseq
    %v594 = vshrl.u32 %v593, 7
    %v595 = vsub.s32 0, %v594
    %v596 = vrot.slane %v196, %v595
    %v597 = vlaneseq
    %v598 = vshrl.u32 %v597, 7
    %v599 = vsub.s32 0, %v598
    %v600 = vrot.slane %v200, %v599
    %v601 = vlaneseq
    %v602 = vshrl.u32 %v601, 7
    %v603 = vsub.s32 0, %v602
    %v604 = vrot.slane %v204, %v603
    %v605 = vlaneseq
    %v606 = vshrl.u32 %v605, 7
    %v607 = vsub.s32 0, %v606
    %v608 = vrot.slane %v208, %v607
    %v609 = vlaneseq
    %v610 = vshrl.u32 %v609, 7
    %v611 = vsub.s32 0, %v610
    %v612 = vrot.slane %v212, %v611
    %v613 = vlaneseq
    %v614 = vshrl.u32 %v613, 7
    %v615 = vsub.s32 0, %v614
    %v616 = vrot.slane %v216, %v615
    %v617 = vlaneseq
    %v618 = vshrl.u32 %v617, 7
    %v619 = vsub.s32 0, %v618
    %v620 = vrot.slane %v220, %v619
    %v621 = vlaneseq
    %v622 = vshrl.u32 %v621, 7
    %v623 = vsub.s32 0, %v622
    %v624 = vrot.slane %v224, %v623
    %v625 = vlaneseq
    %v626 = vshrl.u32 %v625, 7
    %v627 = vsub.s32 0, %v626
    %v628 = vrot.slane %v228, %v627
    %v629 = vlaneseq
    %v630 = vshrl.u32 %v629, 7
    %v631 = vsub.s32 0, %v630
    %v632 = vrot.slane %v232, %v631
    %v633 = vlaneseq
    %v634 = vshrl.u32 %v633, 7
    %v635 = vsub.s32 0, %v634
    %v636 = vrot.slane %v236, %v635
    %v637 = vlaneseq
    %v638 = vshrl.u32 %v637, 7
    %v639 = vsub.s32 0, %v638
    %v640 = vrot.slane %v240, %v639
    %v641 = vlaneseq
    %v642 = vshrl.u32 %v641, 7
    %v643 = vsub.s32 0, %v642
    %v644 = vrot.slane %v244, %v643
    %v645 = vlaneseq
    %v646 = vshrl.u32 %v645, 7
    %v647 = vsub.s32 0, %v646
    %v648 = vrot.slane %v248, %v647
    %v649 = vlaneseq
    %v650 = vshrl.u32 %v649, 7
    %v651 = vsub.s32 0, %v650
    %v652 = vrot.slane %v252, %v651
    %v653 = vlaneseq
    %v654 = vshrl.u32 %v653, 7
    %v655 = vsub.s32 0, %v654
    %v656 = vrot.slane %v256, %v655
    %v657 = vlaneseq
    %v658 = vshrl.u32 %v657, 7
    %v659 = vsub.s32 0, %v658
    %v660 = vrot.slane %v260, %v659
    %v661 = vlaneseq
    %v662 = vshrl.u32 %v661, 7
    %v663 = vsub.s32 0, %v662
    %v664 = vrot.slane %v264, %v663
    %v665 = vlaneseq
    %v666 = vshrl.u32 %v665, 7
    %v667 = vsub.s32 0, %v666
    %v668 = vrot.slane %v268, %v667
    %v669 = vlaneseq
    %v670 = vshrl.u32 %v669, 7
    %v671 = vsub.s32 0, %v670
    %v672 = vrot.slane %v272, %v671
    %v673 = vlaneseq
    %v674 = vshrl.u32 %v673, 7
    %v675 = vsub.s32 0, %v674
    %v676 = vrot.slane %v276, %v675
    %v677 = vlaneseq
    %v678 = vshrl.u32 %v677, 7
    %v679 = vsub.s32 0, %v678
    %v680 = vrot.slane %v280, %v679
    %v681 = vlaneseq
    %v682 = vshrl.u32 %v681, 7
    %v683 = vsub.s32 0, %v682
    %v684 = vrot.slane %v284, %v683
    %v685 = vlaneseq
    %v686 = vshrl.u32 %v685, 7
    %v687 = vsub.s32 0, %v686
    %v688 = vrot.slane %v288, %v687
    %v689 = vlaneseq
    %v690 = vshrl.u32 %v689, 7
    %v691 = vsub.s32 0, %v690
    %v692 = vrot.slane %v292, %v691
    %v693 = vlaneseq
    %v694 = vshrl.u32 %v693, 7
    %v695 = vsub.s32 0, %v694
    %v696 = vrot.slane %v296, %v695
    %v697 = vlaneseq
    %v698 = vshrl.u32 %v697, 7
    %v699 = vsub.s32 0, %v698
    %v700 = vrot.slane %v300, %v699
    %v701 = vlaneseq
    %v702 = vshrl.u32 %v701, 7
    %v703 = vsub.s32 0, %v702
    %v704 = vrot.slane %v304, %v703
    %v705 = vlaneseq
    %v706 = vshrl.u32 %v705, 7
    %v707 = vsub.s32 0, %v706
    %v708 = vrot.slane %v308, %v707
    %v709 = vlaneseq
    %v710 = vshrl.u32 %v709, 7
    %v711 = vsub.s32 0, %v710
    %v712 = vrot.slane %v312, %v711
    %v713 = vlaneseq
    %v714 = vshrl.u32 %v713, 7
    %v715 = vsub.s32 0, %v714
    %v716 = vrot.slane %v316, %v715
    %v717 = vlaneseq
    %v718 = vshrl.u32 %v717, 7
    %v719 = vsub.s32 0, %v718
    %v720 = vrot.slane %v320, %v719
    %v721 = vlaneseq
    %v722 = vshrl.u32 %v721, 7
    %v723 = vsub.s32 0, %v722
    %v724 = vrot.slane %v324, %v723
    %v725 = vlaneseq
    %v726 = vshrl.u32 %v725, 7
    %v727 = vsub.s32 0, %v726
    %v728 = vrot.slane %v328, %v727
    %v729 = vlaneseq
    %v730 = vshrl.u32 %v729, 7
    %v731 = vsub.s32 0, %v730
    %v732 = vrot.slane %v332, %v731
    %v733 = vlaneseq
    %v734 = vshrl.u32 %v733, 7
    %v735 = vsub.s32 0, %v734
    %v736 = vrot.slane %v336, %v735
    %v737 = vlaneseq
    %v738 = vshrl.u32 %v737, 7
    %v739 = vsub.s32 0, %v738
    %v740 = vrot.slane %v340, %v739
    %v741 = vlaneseq
    %v742 = vshrl.u32 %v741, 7
    %v743 = vsub.s32 0, %v742
    %v744 = vrot.slane %v344, %v743
    %v745 = vlaneseq
    %v746 = vshrl.u32 %v745, 7
    %v747 = vsub.s32 0, %v746
    %v748 = vrot.slane %v348, %v747
    %v749 = vlaneseq
    %v750 = vshrl.u32 %v749, 7
    %v751 = vsub.s32 0, %v750
    %v752 = vrot.slane %v352, %v751
    %v753 = vlaneseq
    %v754 = vshrl.u32 %v753, 7
    %v755 = vsub.s32 0, %v754
    %v756 = vrot.slane %v356, %v755
    %v757 = vlaneseq
    %v758 = vshrl.u32 %v757, 7
    %v759 = vsub.s32 0, %v758
    %v760 = vrot.slane %v360, %v759
    %v761 = vlaneseq
    %v762 = vshrl.u32 %v761, 7
    %v763 = vsub.s32 0, %v762
    %v764 = vrot.slane %v364, %v763
    %v765 = vlaneseq
    %v766 = vshrl.u32 %v765, 7
    %v767 = vsub.s32 0, %v766
    %v768 = vrot.slane %v368, %v767
    %v769 = vlaneseq
    %v770 = vshrl.u32 %v769, 7
    %v771 = vsub.s32 0, %v770
    %v772 = vrot.slane %v372, %v771
    %v773 = vlaneseq
    %v774 = vshrl.u32 %v773, 7
    %v775 = vsub.s32 0, %v774
    %v776 = vrot.slane %v376, %v775
    %v777 = vlaneseq
    %v778 = vshrl.u32 %v777, 7
    %v779 = vsub.s32 0, %v778
    %v780 = vrot.slane %v380, %v779
    %v781 = vlaneseq
    %v782 = vshrl.u32 %v781, 7
    %v783 = vsub.s32 0, %v782
    %v784 = vrot.slane %v384, %v783
    %v785 = vlaneseq
    %v786 = vshrl.u32 %v785, 7
    %v787 = vsub.s32 0, %v786
    %v788 = vrot.slane %v388, %v787
    %v789 = vlaneseq
    %v790 = vshrl.u32 %v789, 7
    %v791 = vsub.s32 0, %v790
    %v792 = vrot.slane %v392, %v791
    %v793 = vlaneseq
    %v794 = vshrl.u32 %v793, 7
    %v795 = vsub.s32 0, %v794
    %v796 = vrot.slane %v396, %v795
    %v797 = vlaneseq
    %v798 = vshrl.u32 %v797, 7
    %v799 = vsub.s32 0, %v798
    %v800 = vrot.slane %v400, %v799
    %v801 = vlaneseq
    %v802 = vshrl.u32 %v801, 7
    %v803 = vsub.s32 0, %v802
    %v804 = vrot.slane %v404, %v803
    %v805 = vlaneseq
    %v806 = vshrl.u32 %v805, 7
    %v807 = vsub.s32 0, %v806
    %v808 = vrot.slane %v408, %v807
    %v809 = vlaneseq
    %v810 = vshrl.u32 %v809, 7
    %v811 = vsub.s32 0, %v810
    %v812 = vrot.slane %v412, %v811
    %v813 = vlaneseq
    %v814 = vshrl.u32 %v813, 7
    %v815 = vsub.s32 0, %v814
    %v816 = vrot.slane %v416, %v815
    %v817 = vlaneseq
    %v818 = vshrl.u32 %v817, 7
    %v819 = vsub.s32 0, %v818
    %v820 = vrot.slane %v420, %v819
    %v821 = vlaneseq
    %v822 = vshrl.u32 %v821, 7
    %v823 = vsub.s32 0, %v822
    %v824 = vrot.slane %v424, %v823
    %v825 = vlaneseq
    %v826 = vshrl.u32 %v825, 7
    %v827 = vsub.s32 0, %v826
    %v828 = vrot.slane %v428, %v827
    %v829 = vlaneseq
    %v830 = vshrl.u32 %v829, 7
    %v831 = vsub.s32 0, %v830
    %v832 = vrot.slane %v432, %v831
    %v833 = vlaneseq
    %v834 = vshrl.u32 %v833, 7
    %v835 = vsub.s32 0, %v834
    %v836 = vrot.slane %v436, %v835
    %v837 = vlaneseq
    %v838 = vshrl.u32 %v837, 7
    %v839 = vsub.s32 0, %v838
    %v840 = vrot.slane %v440, %v839
    %v841 = vlaneseq
    %v842 = vshrl.u32 %v841, 7
    %v843 = vsub.s32 0, %v842
    %v844 = vrot.slane %v444, %v843
    %v845 = vlaneseq
    %v846 = vshrl.u32 %v845, 7
    %v847 = vsub.s32 0, %v846
    %v848 = vrot.slane %v448, %v847
    %v849 = vlaneseq
    %v850 = vshrl.u32 %v849, 7
    %v851 = vsub.s32 0, %v850
    %v852 = vrot.slane %v452, %v851
    %v853 = vlaneseq
    %v854 = vshrl.u32 %v853, 7
    %v855 = vsub.s32 0, %v854
    %v856 = vrot.slane %v456, %v855
    %v857 = vlaneseq
    %v858 = vshrl.u32 %v857, 7
    %v859 = vsub.s32 0, %v858
    %v860 = vrot.slane %v460, %v859
    %v861 = vlaneseq
    %v862 = vshrl.u32 %v861, 7
    %v863 = vsub.s32 0, %v862
    %v864 = vrot.slane %v464, %v863
    %v865 = vlaneseq
    %v866 = vshrl.u32 %v865, 7
    %v867 = vsub.s32 0, %v866
    %v868 = vrot.slane %v468, %v867
    %v869 = vlaneseq
    %v870 = vshrl.u32 %v869, 7
    %v871 = vsub.s32 0, %v870
    %v872 = vrot.slane %v472, %v871
    %v873 = vlaneseq
    %v874 = vshrl.u32 %v873, 7
    %v875 = vsub.s32 0, %v874
    %v876 = vrot.slane %v476, %v875
    %v877 = vlaneseq
    %v878 = vshrl.u32 %v877, 7
    %v879 = vsub.s32 0, %v878
    %v880 = vrot.slane %v480, %v879
    %v881 = vlaneseq
    %v882 = vshrl.u32 %v881, 7
    %v883 = vsub.s32 0, %v882
    %v884 = vrot.slane %v484, %v883
    %v885 = vlaneseq
    %v886 = vshrl.u32 %v885, 7
    %v887 = vsub.s32 0, %v886
    %v888 = vrot.slane %v488, %v887
    %v889 = vlaneseq
    %v890 = vshrl.u32 %v889, 7
    %v891 = vsub.s32 0, %v890
    %v892 = vrot.slane %v492, %v891
    %v973 = vunpack.c.l.b16 %v43
    %v974 = vunpack.c.h.b16 %v43
    %v975 = vunpack.c.l.b16 %v44
    %v976 = vunpack.c.h.b16 %v44
    %v977 = vunpack.c.l.b16 %v45
    %v978 = vunpack.c.h.b16 %v45
    %v979 = vunpack.c.l.b16 %v46
    %v980 = vunpack.c.h.b16 %v46
    %v981 = vunpack.c.l.b16 %v47
    %v982 = vunpack.c.h.b16 %v47
    %v983 = vunpack.c.l.b16 %v48
    %v984 = vunpack.c.h.b16 %v48
    %v985 = vunpack.c.l.b16 %v49
    %v986 = vunpack.c.h.b16 %v49
    %v987 = vunpack.c.l.b16 %v50
    %v988 = vunpack.c.h.b16 %v50
    %v989 = vunpack.c.l.b16 %v51
    %v990 = vunpack.c.h.b16 %v51
    %v991 = vunpack.c.l.b16 %v52
    %v992 = vunpack.c.h.b16 %v52
    %v993 = vunpack.c.l.b16 %v53
    %v994 = vunpack.c.h.b16 %v53
    %v995 = vunpack.c.l.b16 %v54
    %v996 = vunpack.c.h.b16 %v54
    %v997 = vunpack.c.l.b16 %v55
    %v998 = vunpack.c.h.b16 %v55
    %v999 = vunpack.c.l.b16 %v56
    %v1000 = vunpack.c.h.b16 %v56
    %v1001 = vunpack.c.l.b16 %v57
    %v1002 = vunpack.c.h.b16 %v57
    %v1003 = vunpack.c.l.b16 %v58
    %v1004 = vunpack.c.h.b16 %v58
    %v1005 = vunpack.c.l.b16 %v59
    %v1006 = vunpack.c.h.b16 %v59
    %v1007 = vunpack.c.l.b16 %v60
    %v1008 = vunpack.c.h.b16 %v60
    %v1009 = vunpack.c.l.b16 %v61
    %v1010 = vunpack.c.h.b16 %v61
    %v1011 = vunpack.c.l.b16 %v62
    %v1012 = vunpack.c.h.b16 %v62
    %v1013 = vunpack.c.l.b16 %v63
    %v1014 = vunpack.c.h.b16 %v63
    %v1015 = vunpack.c.l.b16 %v64
    %v1016 = vunpack.c.h.b16 %v64
    %v1017 = vunpack.c.l.b16 %v65
    %v1018 = vunpack.c.h.b16 %v65
    %v1019 = vunpack.c.l.b16 %v66
    %v1020 = vunpack.c.h.b16 %v66
    %v1021 = vunpack.c.l.b16 %v67
    %v1022 = vunpack.c.h.b16 %v67
    %v1023 = vunpack.c.l.b16 %v68
    %v1024 = vunpack.c.h.b16 %v68
    %v1025 = vunpack.c.l.b16 %v69
    %v1026 = vunpack.c.h.b16 %v69
    %v1027 = vunpack.c.l.b16 %v70
    %v1028 = vunpack.c.h.b16 %v70
    %v1029 = vunpack.c.l.b16 %v71
    %v1030 = vunpack.c.h.b16 %v71
    %v1031 = vunpack.c.l.b16 %v72
    %v1032 = vunpack.c.h.b16 %v72
    %v1033 = vunpack.c.l.b16 %v73
    %v1034 = vunpack.c.h.b16 %v73
    %v1035 = vunpack.c.l.b16 %v74
    %v1036 = vunpack.c.h.b16 %v74
    %v1037 = vunpack.c.l.b16 %v75
    %v1038 = vunpack.c.h.b16 %v75
    %v1039 = vunpack.c.l.b16 %v76
    %v1040 = vunpack.c.h.b16 %v76
    %v1041 = vunpack.c.l.b16 %v77
    %v1042 = vunpack.c.h.b16 %v77
    %v1043 = vunpack.c.l.b16 %v78
    %v1044 = vunpack.c.h.b16 %v78
    %v1045 = vunpack.c.l.b16 %v79
    %v1046 = vunpack.c.h.b16 %v79
    %v1047 = vunpack.c.l.b16 %v80
    %v1048 = vunpack.c.h.b16 %v80
    %v1049 = vunpack.c.l.b16 %v81
    %v1050 = vunpack.c.h.b16 %v81
    %v1051 = vunpack.c.l.b16 %v82
    %v1052 = vunpack.c.h.b16 %v82
    %v1053 = vunpack.c.l.b16 %v83
    %v1054 = vunpack.c.h.b16 %v83
    %v1055 = vunpack.c.l.b16 %v84
    %v1056 = vunpack.c.h.b16 %v84
    %v1057 = vunpack.c.l.b16 %v85
    %v1058 = vunpack.c.h.b16 %v85
    %v1059 = vunpack.c.l.b16 %v86
    %v1060 = vunpack.c.h.b16 %v86
    %v1061 = vunpack.c.l.b16 %v87
    %v1062 = vunpack.c.h.b16 %v87
    %v1063 = vunpack.c.l.b16 %v88
    %v1064 = vunpack.c.h.b16 %v88
    %v1065 = vunpack.c.l.b16 %v89
    %v1066 = vunpack.c.h.b16 %v89
    %v1067 = vunpack.c.l.b16 %v90
    %v1068 = vunpack.c.h.b16 %v90
    %v1069 = vunpack.c.l.b16 %v91
    %v1070 = vunpack.c.h.b16 %v91
    %v1071 = vunpack.c.l.b16 %v92
    %v1072 = vunpack.c.h.b16 %v92
    %v1073 = vunpack.c.l.b16 %v93
    %v1074 = vunpack.c.h.b16 %v93
    %v1075 = vunpack.c.l.b16 %v94
    %v1076 = vunpack.c.h.b16 %v94
    %v1077 = vunpack.c.l.b16 %v95
    %v1078 = vunpack.c.h.b16 %v95
    %v1079 = vunpack.c.l.b16 %v96
    %v1080 = vunpack.c.h.b16 %v96
    %v1081 = vunpack.c.l.b16 %v97
    %v1082 = vunpack.c.h.b16 %v97
    %v1083 = vunpack.c.l.b16 %v98
    %v1084 = vunpack.c.h.b16 %v98
    %v1085 = vunpack.c.l.b16 %v99
    %v1086 = vunpack.c.h.b16 %v99
    %v1087 = vunpack.c.l.b16 %v100
    %v1088 = vunpack.c.h.b16 %v100
    %v1089 = vunpack.c.l.b16 %v101
    %v1090 = vunpack.c.h.b16 %v101
    %v1091 = vunpack.c.l.b16 %v102
    %v1092 = vunpack.c.h.b16 %v102
    %v1093 = vunpack.c.l.b16 %v103
    %v1094 = vunpack.c.h.b16 %v103
    %v1095 = vunpack.c.l.b16 %v104
    %v1096 = vunpack.c.h.b16 %v104
    %v1097 = vunpack.c.l.b16 %v105
    %v1098 = vunpack.c.h.b16 %v105
    %v1099 = vunpack.c.l.b16 %v106
    %v1100 = vunpack.c.h.b16 %v106
    %v1101 = vunpack.c.l.b16 %v107
    %v1102 = vunpack.c.h.b16 %v107
    %v1103 = vunpack.c.l.b16 %v108
    %v1104 = vunpack.c.h.b16 %v108
    %v1105 = vunpack.c.l.b16 %v109
    %v1106 = vunpack.c.h.b16 %v109
    %v1107 = vunpack.c.l.b16 %v110
    %v1108 = vunpack.c.h.b16 %v110
    %v1109 = vunpack.c.l.b16 %v111
    %v1110 = vunpack.c.h.b16 %v111
    %v1111 = vunpack.c.l.b16 %v112
    %v1112 = vunpack.c.h.b16 %v112
    %v1113 = vunpack.c.l.b16 %v113
    %v1114 = vunpack.c.h.b16 %v113
    %v1115 = vunpack.c.l.b16 %v114
    %v1116 = vunpack.c.h.b16 %v114
    %v1117 = vunpack.c.l.b16 %v115
    %v1118 = vunpack.c.h.b16 %v115
    %v1119 = vunpack.c.l.b16 %v116
    %v1120 = vunpack.c.h.b16 %v116
    %v1121 = vunpack.c.l.b16 %v117
    %v1122 = vunpack.c.h.b16 %v117
    %v1123 = vunpack.c.l.b16 %v118
    %v1124 = vunpack.c.h.b16 %v118
    %v1125 = vunpack.c.l.b16 %v119
    %v1126 = vunpack.c.h.b16 %v119
    %v1127 = vunpack.c.l.b16 %v120
    %v1128 = vunpack.c.h.b16 %v120
    %v1129 = vunpack.c.l.b16 %v121
    %v1130 = vunpack.c.h.b16 %v121
    %v1131 = vunpack.c.l.b16 %v122
    %v1132 = vunpack.c.h.b16 %v122
    %v1133 = vpack.c.b16 %v1053, %v973
    %v1134 = vpack.c.b16 %v1054, %v974
    %v1135 = vpack.c.b16 %v1055, %v975
    %v1136 = vpack.c.b16 %v1056, %v976
    %v1137 = vpack.c.b16 %v1057, %v977
    %v1138 = vpack.c.b16 %v1058, %v978
    %v1139 = vpack.c.b16 %v1059, %v979
    %v1140 = vpack.c.b16 %v1060, %v980
    %v1141 = vpack.c.b16 %v1061, %v981
    %v1142 = vpack.c.b16 %v1062, %v982
    %v1143 = vpack.c.b16 %v1063, %v983
    %v1144 = vpack.c.b16 %v1064, %v984
    %v1145 = vpack.c.b16 %v1065, %v985
    %v1146 = vpack.c.b16 %v1066, %v986
    %v1147 = vpack.c.b16 %v1067, %v987
    %v1148 = vpack.c.b16 %v1068, %v988
    %v1149 = vpack.c.b16 %v1069, %v989
    %v1150 = vpack.c.b16 %v1070, %v990
    %v1151 = vpack.c.b16 %v1071, %v991
    %v1152 = vpack.c.b16 %v1072, %v992
    %v1153 = vpack.c.b16 %v1073, %v993
    %v1154 = vpack.c.b16 %v1074, %v994
    %v1155 = vpack.c.b16 %v1075, %v995
    %v1156 = vpack.c.b16 %v1076, %v996
    %v1157 = vpack.c.b16 %v1077, %v997
    %v1158 = vpack.c.b16 %v1078, %v998
    %v1159 = vpack.c.b16 %v1079, %v999
    %v1160 = vpack.c.b16 %v1080, %v1000
    %v1161 = vpack.c.b16 %v1081, %v1001
    %v1162 = vpack.c.b16 %v1082, %v1002
    %v1163 = vpack.c.b16 %v1083, %v1003
    %v1164 = vpack.c.b16 %v1084, %v1004
    %v1165 = vpack.c.b16 %v1085, %v1005
    %v1166 = vpack.c.b16 %v1086, %v1006
    %v1167 = vpack.c.b16 %v1087, %v1007
    %v1168 = vpack.c.b16 %v1088, %v1008
    %v1169 = vpack.c.b16 %v1089, %v1009
    %v1170 = vpack.c.b16 %v1090, %v1010
    %v1171 = vpack.c.b16 %v1091, %v1011
    %v1172 = vpack.c.b16 %v1092, %v1012
    %v1173 = vpack.c.b16 %v1093, %v1013
    %v1174 = vpack.c.b16 %v1094, %v1014
    %v1175 = vpack.c.b16 %v1095, %v1015
    %v1176 = vpack.c.b16 %v1096, %v1016
    %v1177 = vpack.c.b16 %v1097, %v1017
    %v1178 = vpack.c.b16 %v1098, %v1018
    %v1179 = vpack.c.b16 %v1099, %v1019
    %v1180 = vpack.c.b16 %v1100, %v1020
    %v1181 = vpack.c.b16 %v1101, %v1021
    %v1182 = vpack.c.b16 %v1102, %v1022
    %v1183 = vpack.c.b16 %v1103, %v1023
    %v1184 = vpack.c.b16 %v1104, %v1024
    %v1185 = vpack.c.b16 %v1105, %v1025
    %v1186 = vpack.c.b16 %v1106, %v1026
    %v1187 = vpack.c.b16 %v1107, %v1027
    %v1188 = vpack.c.b16 %v1108, %v1028
    %v1189 = vpack.c.b16 %v1109, %v1029
    %v1190 = vpack.c.b16 %v1110, %v1030
    %v1191 = vpack.c.b16 %v1111, %v1031
    %v1192 = vpack.c.b16 %v1112, %v1032
    %v1193 = vpack.c.b16 %v1113, %v1033
    %v1194 = vpack.c.b16 %v1114, %v1034
    %v1195 = vpack.c.b16 %v1115, %v1035
    %v1196 = vpack.c.b16 %v1116, %v1036
    %v1197 = vpack.c.b16 %v1117, %v1037
    %v1198 = vpack.c.b16 %v1118, %v1038
    %v1199 = vpack.c.b16 %v1119, %v1039
    %v1200 = vpack.c.b16 %v1120, %v1040
    %v1201 = vpack.c.b16 %v1121, %v1041
    %v1202 = vpack.c.b16 %v1122, %v1042
    %v1203 = vpack.c.b16 %v1123, %v1043
    %v1204 = vpack.c.b16 %v1124, %v1044
    %v1205 = vpack.c.b16 %v1125, %v1045
    %v1206 = vpack.c.b16 %v1126, %v1046
    %v1207 = vpack.c.b16 %v1127, %v1047
    %v1208 = vpack.c.b16 %v1128, %v1048
    %v1209 = vpack.c.b16 %v1129, %v1049
    %v1210 = vpack.c.b16 %v1130, %v1050
    %v1211 = vpack.c.b16 %v1131, %v1051
    %v1212 = vpack.c.b16 %v1132, %v1052
    %vm1213 = vcmask 80896
    %v1215 = vsel %vm1213, %v42, 0
    %vm1217 = vcmask 1044480
    %v1219 = vsel %vm1217, %v1133, 0
    %v1222 = vsel %vm1217, %v1134, 0
    %v1225 = vsel %vm1217, %v1135, 0
    %v1228 = vsel %vm1217, %v1136, 0
    %v1231 = vsel %vm1217, %v1137, 0
    %v1234 = vsel %vm1217, %v1138, 0
    %v1237 = vsel %vm1217, %v1139, 0
    %v1240 = vsel %vm1217, %v1140, 0
    %v1243 = vsel %vm1217, %v1141, 0
    %v1246 = vsel %vm1217, %v1142, 0
    %v1249 = vsel %vm1217, %v1143, 0
    %v1252 = vsel %vm1217, %v1144, 0
    %v1255 = vsel %vm1217, %v1145, 0
    %v1258 = vsel %vm1217, %v1146, 0
    %v1261 = vsel %vm1217, %v1147, 0
    %v1264 = vsel %vm1217, %v1148, 0
    %v1267 = vsel %vm1217, %v1149, 0
    %v1270 = vsel %vm1217, %v1150, 0
    %v1273 = vsel %vm1217, %v1151, 0
    %v1276 = vsel %vm1217, %v1152, 0
    %v1279 = vsel %vm1217, %v1153, 0
    %v1282 = vsel %vm1217, %v1154, 0
    %v1285 = vsel %vm1217, %v1155, 0
    %v1288 = vsel %vm1217, %v1156, 0
    %v1291 = vsel %vm1217, %v1157, 0
    %v1294 = vsel %vm1217, %v1158, 0
    %v1297 = vsel %vm1217, %v1159, 0
    %v1300 = vsel %vm1217, %v1160, 0
    %v1303 = vsel %vm1217, %v1161, 0
    %v1306 = vsel %vm1217, %v1162, 0
    %v1309 = vsel %vm1217, %v1163, 0
    %v1312 = vsel %vm1217, %v1164, 0
    %v1315 = vsel %vm1217, %v1165, 0
    %v1318 = vsel %vm1217, %v1166, 0
    %v1321 = vsel %vm1217, %v1167, 0
    %v1324 = vsel %vm1217, %v1168, 0
    %v1327 = vsel %vm1217, %v1169, 0
    %v1330 = vsel %vm1217, %v1170, 0
    %v1333 = vsel %vm1217, %v1171, 0
    %v1336 = vsel %vm1217, %v1172, 0
    %v1339 = vsel %vm1217, %v1173, 0
    %v1342 = vsel %vm1217, %v1174, 0
    %v1345 = vsel %vm1217, %v1175, 0
    %v1348 = vsel %vm1217, %v1176, 0
    %v1351 = vsel %vm1217, %v1177, 0
    %v1354 = vsel %vm1217, %v1178, 0
    %v1357 = vsel %vm1217, %v1179, 0
    %v1360 = vsel %vm1217, %v1180, 0
    %v1363 = vsel %vm1217, %v1181, 0
    %v1366 = vsel %vm1217, %v1182, 0
    %v1369 = vsel %vm1217, %v1183, 0
    %v1372 = vsel %vm1217, %v1184, 0
    %v1375 = vsel %vm1217, %v1185, 0
    %v1378 = vsel %vm1217, %v1186, 0
    %v1381 = vsel %vm1217, %v1187, 0
    %v1384 = vsel %vm1217, %v1188, 0
    %v1387 = vsel %vm1217, %v1189, 0
    %v1390 = vsel %vm1217, %v1190, 0
    %v1393 = vsel %vm1217, %v1191, 0
    %v1396 = vsel %vm1217, %v1192, 0
    %v1399 = vsel %vm1217, %v1193, 0
    %v1402 = vsel %vm1217, %v1194, 0
    %v1405 = vsel %vm1217, %v1195, 0
    %v1408 = vsel %vm1217, %v1196, 0
    %v1411 = vsel %vm1217, %v1197, 0
    %v1414 = vsel %vm1217, %v1198, 0
    %v1417 = vsel %vm1217, %v1199, 0
    %v1420 = vsel %vm1217, %v1200, 0
    %v1423 = vsel %vm1217, %v1201, 0
    %v1426 = vsel %vm1217, %v1202, 0
    %v1429 = vsel %vm1217, %v1203, 0
    %v1432 = vsel %vm1217, %v1204, 0
    %v1435 = vsel %vm1217, %v1205, 0
    %v1438 = vsel %vm1217, %v1206, 0
    %v1441 = vsel %vm1217, %v1207, 0
    %v1444 = vsel %vm1217, %v1208, 0
    %v1447 = vsel %vm1217, %v1209, 0
    %v1450 = vsel %vm1217, %v1210, 0
    %v1453 = vsel %vm1217, %v1211, 0
    %v1456 = vsel %vm1217, %v1212, 0
    %1458 = vmatprep.subr.bf16.mxu0 0
    %1459 = vmatpush1.bf16.msra.mxu0 0
    %1460 = vmatprep.subr.bf16.mxu0 0
    %1461 = vmatpush1.bf16.msra.mxu0 0
    %1462 = vmatprep.subr.bf16.mxu0 0
    %1463 = vmatpush1.bf16.msra.mxu0 0
    %1464 = vmatprep.subr.bf16.mxu0 0
    %1465 = vmatpush1.bf16.msra.mxu0 0
    %1466 = vmatprep.subr.bf16.mxu0 0
    %1467 = vmatpush1.bf16.msra.mxu0 0
    %1468 = vmatprep.subr.bf16.mxu0 0
    %1469 = vmatpush1.bf16.msra.mxu0 0
    %1470 = vmatprep.subr.bf16.mxu0 0
    %1471 = vmatpush1.bf16.msra.mxu0 0
    %1472 = vmatprep.subr.bf16.mxu0 %v1222
    %1473 = vmatpush1.bf16.msra.mxu0 %v1219
    %1474 = vmatprep.subr.bf16.mxu0 0
    %1475 = vmatpush2.bf16.msra.mxu0 0
    %1476 = vmatprep.subr.bf16.mxu0 0
    %1477 = vmatpush2.bf16.msra.mxu0 0
    %1478 = vmatprep.subr.bf16.mxu0 0
    %1479 = vmatpush2.bf16.msra.mxu0 0
    %1480 = vmatprep.subr.bf16.mxu0 0
    %1481 = vmatpush2.bf16.msra.mxu0 0
    %1482 = vmatprep.subr.bf16.mxu0 0
    %1483 = vmatpush2.bf16.msra.mxu0 0
    %1484 = vmatprep.subr.bf16.mxu0 0
    %1485 = vmatpush2.bf16.msra.mxu0 0
    %1486 = vmatprep.subr.bf16.mxu0 0
    %1487 = vmatpush2.bf16.msra.mxu0 0
    %1488 = vmatprep.subr.bf16.mxu0 0
    %1489 = vmatpush2.bf16.msra.mxu0 0
    %1490 = vmatprep.mubr.bf16.mxu0 0
    %1491 = vmatmul.mubr.bf16.gmra.mxu0 %v1215
    %v1492 = vpop.f32.mrf.mxu0
    %v1493 = vadd.f32 %v576, %v1492
    %v1494 = vpop.f32.mrf.mxu0
    %v1495 = vadd.f32 %v580, %v1494
    %v1496 = vpop.f32.mrf.mxu0
    %v1497 = vpop.f32.mrf.mxu0
    %1498 = vdwg.mxu0
    %1499 = vmatprep.subr.bf16.mxu0 0
    %1500 = vmatpush1.bf16.msra.mxu0 0
    %1501 = vmatprep.subr.bf16.mxu0 0
    %1502 = vmatpush1.bf16.msra.mxu0 0
    %1503 = vmatprep.subr.bf16.mxu0 0
    %1504 = vmatpush1.bf16.msra.mxu0 0
    %1505 = vmatprep.subr.bf16.mxu0 0
    %1506 = vmatpush1.bf16.msra.mxu0 0
    %1507 = vmatprep.subr.bf16.mxu0 0
    %1508 = vmatpush1.bf16.msra.mxu0 0
    %1509 = vmatprep.subr.bf16.mxu0 0
    %1510 = vmatpush1.bf16.msra.mxu0 0
    %1511 = vmatprep.subr.bf16.mxu0 0
    %1512 = vmatpush1.bf16.msra.mxu0 0
    %1513 = vmatprep.subr.bf16.mxu0 %v1228
    %1514 = vmatpush1.bf16.msra.mxu0 %v1225
    %1515 = vmatprep.subr.bf16.mxu0 0
    %1516 = vmatpush2.bf16.msra.mxu0 0
    %1517 = vmatprep.subr.bf16.mxu0 0
    %1518 = vmatpush2.bf16.msra.mxu0 0
    %1519 = vmatprep.subr.bf16.mxu0 0
    %1520 = vmatpush2.bf16.msra.mxu0 0
    %1521 = vmatprep.subr.bf16.mxu0 0
    %1522 = vmatpush2.bf16.msra.mxu0 0
    %1523 = vmatprep.subr.bf16.mxu0 0
    %1524 = vmatpush2.bf16.msra.mxu0 0
    %1525 = vmatprep.subr.bf16.mxu0 0
    %1526 = vmatpush2.bf16.msra.mxu0 0
    %1527 = vmatprep.subr.bf16.mxu0 0
    %1528 = vmatpush2.bf16.msra.mxu0 0
    %1529 = vmatprep.subr.bf16.mxu0 0
    %1530 = vmatpush2.bf16.msra.mxu0 0
    %1531 = vmatprep.mubr.bf16.mxu0 0
    %1532 = vmatmul.mubr.bf16.gmra.mxu0 %v1215
    %v1533 = vpop.f32.mrf.mxu0
    %v1534 = vadd.f32 %v584, %v1533
    %v1535 = vpop.f32.mrf.mxu0
    %v1536 = vadd.f32 %v588, %v1535
    %v1537 = vpop.f32.mrf.mxu0
    %v1538 = vpop.f32.mrf.mxu0
    %1539 = vdwg.mxu0
    %1540 = vmatprep.subr.bf16.mxu0 0
    %1541 = vmatpush1.bf16.msra.mxu0 0
    %1542 = vmatprep.subr.bf16.mxu0 0
    %1543 = vmatpush1.bf16.msra.mxu0 0
    %1544 = vmatprep.subr.bf16.mxu0 0
    %1545 = vmatpush1.bf16.msra.mxu0 0
    %1546 = vmatprep.subr.bf16.mxu0 0
    %1547 = vmatpush1.bf16.msra.mxu0 0
    %1548 = vmatprep.subr.bf16.mxu0 0
    %1549 = vmatpush1.bf16.msra.mxu0 0
    %1550 = vmatprep.subr.bf16.mxu0 0
    %1551 = vmatpush1.bf16.msra.mxu0 0
    %1552 = vmatprep.subr.bf16.mxu0 0
    %1553 = vmatpush1.bf16.msra.mxu0 0
    %1554 = vmatprep.subr.bf16.mxu0 %v1234
    %1555 = vmatpush1.bf16.msra.mxu0 %v1231
    %1556 = vmatprep.subr.bf16.mxu0 0
    %1557 = vmatpush2.bf16.msra.mxu0 0
    %1558 = vmatprep.subr.bf16.mxu0 0
    %1559 = vmatpush2.bf16.msra.mxu0 0
    %1560 = vmatprep.subr.bf16.mxu0 0
    %1561 = vmatpush2.bf16.msra.mxu0 0
    %1562 = vmatprep.subr.bf16.mxu0 0
    %1563 = vmatpush2.bf16.msra.mxu0 0
    %1564 = vmatprep.subr.bf16.mxu0 0
    %1565 = vmatpush2.bf16.msra.mxu0 0
    %1566 = vmatprep.subr.bf16.mxu0 0
    %1567 = vmatpush2.bf16.msra.mxu0 0
    %1568 = vmatprep.subr.bf16.mxu0 0
    %1569 = vmatpush2.bf16.msra.mxu0 0
    %1570 = vmatprep.subr.bf16.mxu0 0
    %1571 = vmatpush2.bf16.msra.mxu0 0
    %1572 = vmatprep.mubr.bf16.mxu0 0
    %1573 = vmatmul.mubr.bf16.gmra.mxu0 %v1215
    %v1574 = vpop.f32.mrf.mxu0
    %v1575 = vadd.f32 %v592, %v1574
    %v1576 = vpop.f32.mrf.mxu0
    %v1577 = vadd.f32 %v596, %v1576
    %v1578 = vpop.f32.mrf.mxu0
    %v1579 = vpop.f32.mrf.mxu0
    %1580 = vdwg.mxu0
    %1581 = vmatprep.subr.bf16.mxu0 0
    %1582 = vmatpush1.bf16.msra.mxu0 0
    %1583 = vmatprep.subr.bf16.mxu0 0
    %1584 = vmatpush1.bf16.msra.mxu0 0
    %1585 = vmatprep.subr.bf16.mxu0 0
    %1586 = vmatpush1.bf16.msra.mxu0 0
    %1587 = vmatprep.subr.bf16.mxu0 0
    %1588 = vmatpush1.bf16.msra.mxu0 0
    %1589 = vmatprep.subr.bf16.mxu0 0
    %1590 = vmatpush1.bf16.msra.mxu0 0
    %1591 = vmatprep.subr.bf16.mxu0 0
    %1592 = vmatpush1.bf16.msra.mxu0 0
    %1593 = vmatprep.subr.bf16.mxu0 0
    %1594 = vmatpush1.bf16.msra.mxu0 0
    %1595 = vmatprep.subr.bf16.mxu0 %v1240
    %1596 = vmatpush1.bf16.msra.mxu0 %v1237
    %1597 = vmatprep.subr.bf16.mxu0 0
    %1598 = vmatpush2.bf16.msra.mxu0 0
    %1599 = vmatprep.subr.bf16.mxu0 0
    %1600 = vmatpush2.bf16.msra.mxu0 0
    %1601 = vmatprep.subr.bf16.mxu0 0
    %1602 = vmatpush2.bf16.msra.mxu0 0
    %1603 = vmatprep.subr.bf16.mxu0 0
    %1604 = vmatpush2.bf16.msra.mxu0 0
    %1605 = vmatprep.subr.bf16.mxu0 0
    %1606 = vmatpush2.bf16.msra.mxu0 0
    %1607 = vmatprep.subr.bf16.mxu0 0
    %1608 = vmatpush2.bf16.msra.mxu0 0
    %1609 = vmatprep.subr.bf16.mxu0 0
    %1610 = vmatpush2.bf16.msra.mxu0 0
    %1611 = vmatprep.subr.bf16.mxu0 0
    %1612 = vmatpush2.bf16.msra.mxu0 0
    %1613 = vmatprep.mubr.bf16.mxu0 0
    %1614 = vmatmul.mubr.bf16.gmra.mxu0 %v1215
    %v1615 = vpop.f32.mrf.mxu0
    %v1616 = vadd.f32 %v600, %v1615
    %v1617 = vpop.f32.mrf.mxu0
    %v1618 = vadd.f32 %v604, %v1617
    %v1619 = vpop.f32.mrf.mxu0
    %v1620 = vpop.f32.mrf.mxu0
    %1621 = vdwg.mxu0
    %1622 = vmatprep.subr.bf16.mxu0 0
    %1623 = vmatpush1.bf16.msra.mxu0 0
    %1624 = vmatprep.subr.bf16.mxu0 0
    %1625 = vmatpush1.bf16.msra.mxu0 0
    %1626 = vmatprep.subr.bf16.mxu0 0
    %1627 = vmatpush1.bf16.msra.mxu0 0
    %1628 = vmatprep.subr.bf16.mxu0 0
    %1629 = vmatpush1.bf16.msra.mxu0 0
    %1630 = vmatprep.subr.bf16.mxu0 0
    %1631 = vmatpush1.bf16.msra.mxu0 0
    %1632 = vmatprep.subr.bf16.mxu0 0
    %1633 = vmatpush1.bf16.msra.mxu0 0
    %1634 = vmatprep.subr.bf16.mxu0 0
    %1635 = vmatpush1.bf16.msra.mxu0 0
    %1636 = vmatprep.subr.bf16.mxu0 %v1246
    %1637 = vmatpush1.bf16.msra.mxu0 %v1243
    %1638 = vmatprep.subr.bf16.mxu0 0
    %1639 = vmatpush2.bf16.msra.mxu0 0
    %1640 = vmatprep.subr.bf16.mxu0 0
    %1641 = vmatpush2.bf16.msra.mxu0 0
    %1642 = vmatprep.subr.bf16.mxu0 0
    %1643 = vmatpush2.bf16.msra.mxu0 0
    %1644 = vmatprep.subr.bf16.mxu0 0
    %1645 = vmatpush2.bf16.msra.mxu0 0
    %1646 = vmatprep.subr.bf16.mxu0 0
    %1647 = vmatpush2.bf16.msra.mxu0 0
    %1648 = vmatprep.subr.bf16.mxu0 0
    %1649 = vmatpush2.bf16.msra.mxu0 0
    %1650 = vmatprep.subr.bf16.mxu0 0
    %1651 = vmatpush2.bf16.msra.mxu0 0
    %1652 = vmatprep.subr.bf16.mxu0 0
    %1653 = vmatpush2.bf16.msra.mxu0 0
    %1654 = vmatprep.mubr.bf16.mxu0 0
    %1655 = vmatmul.mubr.bf16.gmra.mxu0 %v1215
    %v1656 = vpop.f32.mrf.mxu0
    %v1657 = vadd.f32 %v608, %v1656
    %v1658 = vpop.f32.mrf.mxu0
    %v1659 = vadd.f32 %v612, %v1658
    %v1660 = vpop.f32.mrf.mxu0
    %v1661 = vpop.f32.mrf.mxu0
    %1662 = vdwg.mxu0
    %1663 = vmatprep.subr.bf16.mxu0 0
    %1664 = vmatpush1.bf16.msra.mxu0 0
    %1665 = vmatprep.subr.bf16.mxu0 0
    %1666 = vmatpush1.bf16.msra.mxu0 0
    %1667 = vmatprep.subr.bf16.mxu0 0
    %1668 = vmatpush1.bf16.msra.mxu0 0
    %1669 = vmatprep.subr.bf16.mxu0 0
    %1670 = vmatpush1.bf16.msra.mxu0 0
    %1671 = vmatprep.subr.bf16.mxu0 0
    %1672 = vmatpush1.bf16.msra.mxu0 0
    %1673 = vmatprep.subr.bf16.mxu0 0
    %1674 = vmatpush1.bf16.msra.mxu0 0
    %1675 = vmatprep.subr.bf16.mxu0 0
    %1676 = vmatpush1.bf16.msra.mxu0 0
    %1677 = vmatprep.subr.bf16.mxu0 %v1252
    %1678 = vmatpush1.bf16.msra.mxu0 %v1249
    %1679 = vmatprep.subr.bf16.mxu0 0
    %1680 = vmatpush2.bf16.msra.mxu0 0
    %1681 = vmatprep.subr.bf16.mxu0 0
    %1682 = vmatpush2.bf16.msra.mxu0 0
    %1683 = vmatprep.subr.bf16.mxu0 0
    %1684 = vmatpush2.bf16.msra.mxu0 0
    %1685 = vmatprep.subr.bf16.mxu0 0
    %1686 = vmatpush2.bf16.msra.mxu0 0
    %1687 = vmatprep.subr.bf16.mxu0 0
    %1688 = vmatpush2.bf16.msra.mxu0 0
    %1689 = vmatprep.subr.bf16.mxu0 0
    %1690 = vmatpush2.bf16.msra.mxu0 0
    %1691 = vmatprep.subr.bf16.mxu0 0
    %1692 = vmatpush2.bf16.msra.mxu0 0
    %1693 = vmatprep.subr.bf16.mxu0 0
    %1694 = vmatpush2.bf16.msra.mxu0 0
    %1695 = vmatprep.mubr.bf16.mxu0 0
    %1696 = vmatmul.mubr.bf16.gmra.mxu0 %v1215
    %v1697 = vpop.f32.mrf.mxu0
    %v1698 = vadd.f32 %v616, %v1697
    %v1699 = vpop.f32.mrf.mxu0
    %v1700 = vadd.f32 %v620, %v1699
    %v1701 = vpop.f32.mrf.mxu0
    %v1702 = vpop.f32.mrf.mxu0
    %1703 = vdwg.mxu0
    %1704 = vmatprep.subr.bf16.mxu0 0
    %1705 = vmatpush1.bf16.msra.mxu0 0
    %1706 = vmatprep.subr.bf16.mxu0 0
    %1707 = vmatpush1.bf16.msra.mxu0 0
    %1708 = vmatprep.subr.bf16.mxu0 0
    %1709 = vmatpush1.bf16.msra.mxu0 0
    %1710 = vmatprep.subr.bf16.mxu0 0
    %1711 = vmatpush1.bf16.msra.mxu0 0
    %1712 = vmatprep.subr.bf16.mxu0 0
    %1713 = vmatpush1.bf16.msra.mxu0 0
    %1714 = vmatprep.subr.bf16.mxu0 0
    %1715 = vmatpush1.bf16.msra.mxu0 0
    %1716 = vmatprep.subr.bf16.mxu0 0
    %1717 = vmatpush1.bf16.msra.mxu0 0
    %1718 = vmatprep.subr.bf16.mxu0 %v1258
    %1719 = vmatpush1.bf16.msra.mxu0 %v1255
    %1720 = vmatprep.subr.bf16.mxu0 0
    %1721 = vmatpush2.bf16.msra.mxu0 0
    %1722 = vmatprep.subr.bf16.mxu0 0
    %1723 = vmatpush2.bf16.msra.mxu0 0
    %1724 = vmatprep.subr.bf16.mxu0 0
    %1725 = vmatpush2.bf16.msra.mxu0 0
    %1726 = vmatprep.subr.bf16.mxu0 0
    %1727 = vmatpush2.bf16.msra.mxu0 0
    %1728 = vmatprep.subr.bf16.mxu0 0
    %1729 = vmatpush2.bf16.msra.mxu0 0
    %1730 = vmatprep.subr.bf16.mxu0 0
    %1731 = vmatpush2.bf16.msra.mxu0 0
    %1732 = vmatprep.subr.bf16.mxu0 0
    %1733 = vmatpush2.bf16.msra.mxu0 0
    %1734 = vmatprep.subr.bf16.mxu0 0
    %1735 = vmatpush2.bf16.msra.mxu0 0
    %1736 = vmatprep.mubr.bf16.mxu0 0
    %1737 = vmatmul.mubr.bf16.gmra.mxu0 %v1215
    %v1738 = vpop.f32.mrf.mxu0
    %v1739 = vadd.f32 %v624, %v1738
    %v1740 = vpop.f32.mrf.mxu0
    %v1741 = vadd.f32 %v628, %v1740
    %v1742 = vpop.f32.mrf.mxu0
    %v1743 = vpop.f32.mrf.mxu0
    %1744 = vdwg.mxu0
    %1745 = vmatprep.subr.bf16.mxu0 0
    %1746 = vmatpush1.bf16.msra.mxu0 0
    %1747 = vmatprep.subr.bf16.mxu0 0
    %1748 = vmatpush1.bf16.msra.mxu0 0
    %1749 = vmatprep.subr.bf16.mxu0 0
    %1750 = vmatpush1.bf16.msra.mxu0 0
    %1751 = vmatprep.subr.bf16.mxu0 0
    %1752 = vmatpush1.bf16.msra.mxu0 0
    %1753 = vmatprep.subr.bf16.mxu0 0
    %1754 = vmatpush1.bf16.msra.mxu0 0
    %1755 = vmatprep.subr.bf16.mxu0 0
    %1756 = vmatpush1.bf16.msra.mxu0 0
    %1757 = vmatprep.subr.bf16.mxu0 0
    %1758 = vmatpush1.bf16.msra.mxu0 0
    %1759 = vmatprep.subr.bf16.mxu0 %v1264
    %1760 = vmatpush1.bf16.msra.mxu0 %v1261
    %1761 = vmatprep.subr.bf16.mxu0 0
    %1762 = vmatpush2.bf16.msra.mxu0 0
    %1763 = vmatprep.subr.bf16.mxu0 0
    %1764 = vmatpush2.bf16.msra.mxu0 0
    %1765 = vmatprep.subr.bf16.mxu0 0
    %1766 = vmatpush2.bf16.msra.mxu0 0
    %1767 = vmatprep.subr.bf16.mxu0 0
    %1768 = vmatpush2.bf16.msra.mxu0 0
    %1769 = vmatprep.subr.bf16.mxu0 0
    %1770 = vmatpush2.bf16.msra.mxu0 0
    %1771 = vmatprep.subr.bf16.mxu0 0
    %1772 = vmatpush2.bf16.msra.mxu0 0
    %1773 = vmatprep.subr.bf16.mxu0 0
    %1774 = vmatpush2.bf16.msra.mxu0 0
    %1775 = vmatprep.subr.bf16.mxu0 0
    %1776 = vmatpush2.bf16.msra.mxu0 0
    %1777 = vmatprep.mubr.bf16.mxu0 0
    %1778 = vmatmul.mubr.bf16.gmra.mxu0 %v1215
    %v1779 = vpop.f32.mrf.mxu0
    %v1780 = vadd.f32 %v632, %v1779
    %v1781 = vpop.f32.mrf.mxu0
    %v1782 = vadd.f32 %v636, %v1781
    %v1783 = vpop.f32.mrf.mxu0
    %v1784 = vpop.f32.mrf.mxu0
    %1785 = vdwg.mxu0
    %1786 = vmatprep.subr.bf16.mxu0 0
    %1787 = vmatpush1.bf16.msra.mxu0 0
    %1788 = vmatprep.subr.bf16.mxu0 0
    %1789 = vmatpush1.bf16.msra.mxu0 0
    %1790 = vmatprep.subr.bf16.mxu0 0
    %1791 = vmatpush1.bf16.msra.mxu0 0
    %1792 = vmatprep.subr.bf16.mxu0 0
    %1793 = vmatpush1.bf16.msra.mxu0 0
    %1794 = vmatprep.subr.bf16.mxu0 0
    %1795 = vmatpush1.bf16.msra.mxu0 0
    %1796 = vmatprep.subr.bf16.mxu0 0
    %1797 = vmatpush1.bf16.msra.mxu0 0
    %1798 = vmatprep.subr.bf16.mxu0 0
    %1799 = vmatpush1.bf16.msra.mxu0 0
    %1800 = vmatprep.subr.bf16.mxu0 %v1270
    %1801 = vmatpush1.bf16.msra.mxu0 %v1267
    %1802 = vmatprep.subr.bf16.mxu0 0
    %1803 = vmatpush2.bf16.msra.mxu0 0
    %1804 = vmatprep.subr.bf16.mxu0 0
    %1805 = vmatpush2.bf16.msra.mxu0 0
    %1806 = vmatprep.subr.bf16.mxu0 0
    %1807 = vmatpush2.bf16.msra.mxu0 0
    %1808 = vmatprep.subr.bf16.mxu0 0
    %1809 = vmatpush2.bf16.msra.mxu0 0
    %1810 = vmatprep.subr.bf16.mxu0 0
    %1811 = vmatpush2.bf16.msra.mxu0 0
    %1812 = vmatprep.subr.bf16.mxu0 0
    %1813 = vmatpush2.bf16.msra.mxu0 0
    %1814 = vmatprep.subr.bf16.mxu0 0
    %1815 = vmatpush2.bf16.msra.mxu0 0
    %1816 = vmatprep.subr.bf16.mxu0 0
    %1817 = vmatpush2.bf16.msra.mxu0 0
    %1818 = vmatprep.mubr.bf16.mxu0 0
    %1819 = vmatmul.mubr.bf16.gmra.mxu0 %v1215
    %v1820 = vpop.f32.mrf.mxu0
    %v1821 = vadd.f32 %v640, %v1820
    %v1822 = vpop.f32.mrf.mxu0
    %v1823 = vadd.f32 %v644, %v1822
    %v1824 = vpop.f32.mrf.mxu0
    %v1825 = vpop.f32.mrf.mxu0
    %1826 = vdwg.mxu0
    %1827 = vmatprep.subr.bf16.mxu0 0
    %1828 = vmatpush1.bf16.msra.mxu0 0
    %1829 = vmatprep.subr.bf16.mxu0 0
    %1830 = vmatpush1.bf16.msra.mxu0 0
    %1831 = vmatprep.subr.bf16.mxu0 0
    %1832 = vmatpush1.bf16.msra.mxu0 0
    %1833 = vmatprep.subr.bf16.mxu0 0
    %1834 = vmatpush1.bf16.msra.mxu0 0
    %1835 = vmatprep.subr.bf16.mxu0 0
    %1836 = vmatpush1.bf16.msra.mxu0 0
    %1837 = vmatprep.subr.bf16.mxu0 0
    %1838 = vmatpush1.bf16.msra.mxu0 0
    %1839 = vmatprep.subr.bf16.mxu0 0
    %1840 = vmatpush1.bf16.msra.mxu0 0
    %1841 = vmatprep.subr.bf16.mxu0 %v1276
    %1842 = vmatpush1.bf16.msra.mxu0 %v1273
    %1843 = vmatprep.subr.bf16.mxu0 0
    %1844 = vmatpush2.bf16.msra.mxu0 0
    %1845 = vmatprep.subr.bf16.mxu0 0
    %1846 = vmatpush2.bf16.msra.mxu0 0
    %1847 = vmatprep.subr.bf16.mxu0 0
    %1848 = vmatpush2.bf16.msra.mxu0 0
    %1849 = vmatprep.subr.bf16.mxu0 0
    %1850 = vmatpush2.bf16.msra.mxu0 0
    %1851 = vmatprep.subr.bf16.mxu0 0
    %1852 = vmatpush2.bf16.msra.mxu0 0
    %1853 = vmatprep.subr.bf16.mxu0 0
    %1854 = vmatpush2.bf16.msra.mxu0 0
    %1855 = vmatprep.subr.bf16.mxu0 0
    %1856 = vmatpush2.bf16.msra.mxu0 0
    %1857 = vmatprep.subr.bf16.mxu0 0
    %1858 = vmatpush2.bf16.msra.mxu0 0
    %1859 = vmatprep.mubr.bf16.mxu0 0
    %1860 = vmatmul.mubr.bf16.gmra.mxu0 %v1215
    %v1861 = vpop.f32.mrf.mxu0
    %v1862 = vadd.f32 %v648, %v1861
    %v1863 = vpop.f32.mrf.mxu0
    %v1864 = vadd.f32 %v652, %v1863
    %v1865 = vpop.f32.mrf.mxu0
    %v1866 = vpop.f32.mrf.mxu0
    %1867 = vdwg.mxu0
    %1868 = vmatprep.subr.bf16.mxu0 0
    %1869 = vmatpush1.bf16.msra.mxu0 0
    %1870 = vmatprep.subr.bf16.mxu0 0
    %1871 = vmatpush1.bf16.msra.mxu0 0
    %1872 = vmatprep.subr.bf16.mxu0 0
    %1873 = vmatpush1.bf16.msra.mxu0 0
    %1874 = vmatprep.subr.bf16.mxu0 0
    %1875 = vmatpush1.bf16.msra.mxu0 0
    %1876 = vmatprep.subr.bf16.mxu0 0
    %1877 = vmatpush1.bf16.msra.mxu0 0
    %1878 = vmatprep.subr.bf16.mxu0 0
    %1879 = vmatpush1.bf16.msra.mxu0 0
    %1880 = vmatprep.subr.bf16.mxu0 0
    %1881 = vmatpush1.bf16.msra.mxu0 0
    %1882 = vmatprep.subr.bf16.mxu0 %v1282
    %1883 = vmatpush1.bf16.msra.mxu0 %v1279
    %1884 = vmatprep.subr.bf16.mxu0 0
    %1885 = vmatpush2.bf16.msra.mxu0 0
    %1886 = vmatprep.subr.bf16.mxu0 0
    %1887 = vmatpush2.bf16.msra.mxu0 0
    %1888 = vmatprep.subr.bf16.mxu0 0
    %1889 = vmatpush2.bf16.msra.mxu0 0
    %1890 = vmatprep.subr.bf16.mxu0 0
    %1891 = vmatpush2.bf16.msra.mxu0 0
    %1892 = vmatprep.subr.bf16.mxu0 0
    %1893 = vmatpush2.bf16.msra.mxu0 0
    %1894 = vmatprep.subr.bf16.mxu0 0
    %1895 = vmatpush2.bf16.msra.mxu0 0
    %1896 = vmatprep.subr.bf16.mxu0 0
    %1897 = vmatpush2.bf16.msra.mxu0 0
    %1898 = vmatprep.subr.bf16.mxu0 0
    %1899 = vmatpush2.bf16.msra.mxu0 0
    %1900 = vmatprep.mubr.bf16.mxu0 0
    %1901 = vmatmul.mubr.bf16.gmra.mxu0 %v1215
    %v1902 = vpop.f32.mrf.mxu0
    %v1903 = vadd.f32 %v656, %v1902
    %v1904 = vpop.f32.mrf.mxu0
    %v1905 = vadd.f32 %v660, %v1904
    %v1906 = vpop.f32.mrf.mxu0
    %v1907 = vpop.f32.mrf.mxu0
    %1908 = vdwg.mxu0
    %1909 = vmatprep.subr.bf16.mxu0 0
    %1910 = vmatpush1.bf16.msra.mxu0 0
    %1911 = vmatprep.subr.bf16.mxu0 0
    %1912 = vmatpush1.bf16.msra.mxu0 0
    %1913 = vmatprep.subr.bf16.mxu0 0
    %1914 = vmatpush1.bf16.msra.mxu0 0
    %1915 = vmatprep.subr.bf16.mxu0 0
    %1916 = vmatpush1.bf16.msra.mxu0 0
    %1917 = vmatprep.subr.bf16.mxu0 0
    %1918 = vmatpush1.bf16.msra.mxu0 0
    %1919 = vmatprep.subr.bf16.mxu0 0
    %1920 = vmatpush1.bf16.msra.mxu0 0
    %1921 = vmatprep.subr.bf16.mxu0 0
    %1922 = vmatpush1.bf16.msra.mxu0 0
    %1923 = vmatprep.subr.bf16.mxu0 %v1288
    %1924 = vmatpush1.bf16.msra.mxu0 %v1285
    %1925 = vmatprep.subr.bf16.mxu0 0
    %1926 = vmatpush2.bf16.msra.mxu0 0
    %1927 = vmatprep.subr.bf16.mxu0 0
    %1928 = vmatpush2.bf16.msra.mxu0 0
    %1929 = vmatprep.subr.bf16.mxu0 0
    %1930 = vmatpush2.bf16.msra.mxu0 0
    %1931 = vmatprep.subr.bf16.mxu0 0
    %1932 = vmatpush2.bf16.msra.mxu0 0
    %1933 = vmatprep.subr.bf16.mxu0 0
    %1934 = vmatpush2.bf16.msra.mxu0 0
    %1935 = vmatprep.subr.bf16.mxu0 0
    %1936 = vmatpush2.bf16.msra.mxu0 0
    %1937 = vmatprep.subr.bf16.mxu0 0
    %1938 = vmatpush2.bf16.msra.mxu0 0
    %1939 = vmatprep.subr.bf16.mxu0 0
    %1940 = vmatpush2.bf16.msra.mxu0 0
    %1941 = vmatprep.mubr.bf16.mxu0 0
    %1942 = vmatmul.mubr.bf16.gmra.mxu0 %v1215
    %v1943 = vpop.f32.mrf.mxu0
    %v1944 = vadd.f32 %v664, %v1943
    %v1945 = vpop.f32.mrf.mxu0
    %v1946 = vadd.f32 %v668, %v1945
    %v1947 = vpop.f32.mrf.mxu0
    %v1948 = vpop.f32.mrf.mxu0
    %1949 = vdwg.mxu0
    %1950 = vmatprep.subr.bf16.mxu0 0
    %1951 = vmatpush1.bf16.msra.mxu0 0
    %1952 = vmatprep.subr.bf16.mxu0 0
    %1953 = vmatpush1.bf16.msra.mxu0 0
    %1954 = vmatprep.subr.bf16.mxu0 0
    %1955 = vmatpush1.bf16.msra.mxu0 0
    %1956 = vmatprep.subr.bf16.mxu0 0
    %1957 = vmatpush1.bf16.msra.mxu0 0
    %1958 = vmatprep.subr.bf16.mxu0 0
    %1959 = vmatpush1.bf16.msra.mxu0 0
    %1960 = vmatprep.subr.bf16.mxu0 0
    %1961 = vmatpush1.bf16.msra.mxu0 0
    %1962 = vmatprep.subr.bf16.mxu0 0
    %1963 = vmatpush1.bf16.msra.mxu0 0
    %1964 = vmatprep.subr.bf16.mxu0 %v1294
    %1965 = vmatpush1.bf16.msra.mxu0 %v1291
    %1966 = vmatprep.subr.bf16.mxu0 0
    %1967 = vmatpush2.bf16.msra.mxu0 0
    %1968 = vmatprep.subr.bf16.mxu0 0
    %1969 = vmatpush2.bf16.msra.mxu0 0
    %1970 = vmatprep.subr.bf16.mxu0 0
    %1971 = vmatpush2.bf16.msra.mxu0 0
    %1972 = vmatprep.subr.bf16.mxu0 0
    %1973 = vmatpush2.bf16.msra.mxu0 0
    %1974 = vmatprep.subr.bf16.mxu0 0
    %1975 = vmatpush2.bf16.msra.mxu0 0
    %1976 = vmatprep.subr.bf16.mxu0 0
    %1977 = vmatpush2.bf16.msra.mxu0 0
    %1978 = vmatprep.subr.bf16.mxu0 0
    %1979 = vmatpush2.bf16.msra.mxu0 0
    %1980 = vmatprep.subr.bf16.mxu0 0
    %1981 = vmatpush2.bf16.msra.mxu0 0
    %1982 = vmatprep.mubr.bf16.mxu0 0
    %1983 = vmatmul.mubr.bf16.gmra.mxu0 %v1215
    %v1984 = vpop.f32.mrf.mxu0
    %v1985 = vadd.f32 %v672, %v1984
    %v1986 = vpop.f32.mrf.mxu0
    %v1987 = vadd.f32 %v676, %v1986
    %v1988 = vpop.f32.mrf.mxu0
    %v1989 = vpop.f32.mrf.mxu0
    %1990 = vdwg.mxu0
    %1991 = vmatprep.subr.bf16.mxu0 0
    %1992 = vmatpush1.bf16.msra.mxu0 0
    %1993 = vmatprep.subr.bf16.mxu0 0
    %1994 = vmatpush1.bf16.msra.mxu0 0
    %1995 = vmatprep.subr.bf16.mxu0 0
    %1996 = vmatpush1.bf16.msra.mxu0 0
    %1997 = vmatprep.subr.bf16.mxu0 0
    %1998 = vmatpush1.bf16.msra.mxu0 0
    %1999 = vmatprep.subr.bf16.mxu0 0
    %2000 = vmatpush1.bf16.msra.mxu0 0
    %2001 = vmatprep.subr.bf16.mxu0 0
    %2002 = vmatpush1.bf16.msra.mxu0 0
    %2003 = vmatprep.subr.bf16.mxu0 0
    %2004 = vmatpush1.bf16.msra.mxu0 0
    %2005 = vmatprep.subr.bf16.mxu0 %v1300
    %2006 = vmatpush1.bf16.msra.mxu0 %v1297
    %2007 = vmatprep.subr.bf16.mxu0 0
    %2008 = vmatpush2.bf16.msra.mxu0 0
    %2009 = vmatprep.subr.bf16.mxu0 0
    %2010 = vmatpush2.bf16.msra.mxu0 0
    %2011 = vmatprep.subr.bf16.mxu0 0
    %2012 = vmatpush2.bf16.msra.mxu0 0
    %2013 = vmatprep.subr.bf16.mxu0 0
    %2014 = vmatpush2.bf16.msra.mxu0 0
    %2015 = vmatprep.subr.bf16.mxu0 0
    %2016 = vmatpush2.bf16.msra.mxu0 0
    %2017 = vmatprep.subr.bf16.mxu0 0
    %2018 = vmatpush2.bf16.msra.mxu0 0
    %2019 = vmatprep.subr.bf16.mxu0 0
    %2020 = vmatpush2.bf16.msra.mxu0 0
    %2021 = vmatprep.subr.bf16.mxu0 0
    %2022 = vmatpush2.bf16.msra.mxu0 0
    %2023 = vmatprep.mubr.bf16.mxu0 0
    %2024 = vmatmul.mubr.bf16.gmra.mxu0 %v1215
    %v2025 = vpop.f32.mrf.mxu0
    %v2026 = vadd.f32 %v680, %v2025
    %v2027 = vpop.f32.mrf.mxu0
    %v2028 = vadd.f32 %v684, %v2027
    %v2029 = vpop.f32.mrf.mxu0
    %v2030 = vpop.f32.mrf.mxu0
    %2031 = vdwg.mxu0
    %2032 = vmatprep.subr.bf16.mxu0 0
    %2033 = vmatpush1.bf16.msra.mxu0 0
    %2034 = vmatprep.subr.bf16.mxu0 0
    %2035 = vmatpush1.bf16.msra.mxu0 0
    %2036 = vmatprep.subr.bf16.mxu0 0
    %2037 = vmatpush1.bf16.msra.mxu0 0
    %2038 = vmatprep.subr.bf16.mxu0 0
    %2039 = vmatpush1.bf16.msra.mxu0 0
    %2040 = vmatprep.subr.bf16.mxu0 0
    %2041 = vmatpush1.bf16.msra.mxu0 0
    %2042 = vmatprep.subr.bf16.mxu0 0
    %2043 = vmatpush1.bf16.msra.mxu0 0
    %2044 = vmatprep.subr.bf16.mxu0 0
    %2045 = vmatpush1.bf16.msra.mxu0 0
    %2046 = vmatprep.subr.bf16.mxu0 %v1306
    %2047 = vmatpush1.bf16.msra.mxu0 %v1303
    %2048 = vmatprep.subr.bf16.mxu0 0
    %2049 = vmatpush2.bf16.msra.mxu0 0
    %2050 = vmatprep.subr.bf16.mxu0 0
    %2051 = vmatpush2.bf16.msra.mxu0 0
    %2052 = vmatprep.subr.bf16.mxu0 0
    %2053 = vmatpush2.bf16.msra.mxu0 0
    %2054 = vmatprep.subr.bf16.mxu0 0
    %2055 = vmatpush2.bf16.msra.mxu0 0
    %2056 = vmatprep.subr.bf16.mxu0 0
    %2057 = vmatpush2.bf16.msra.mxu0 0
    %2058 = vmatprep.subr.bf16.mxu0 0
    %2059 = vmatpush2.bf16.msra.mxu0 0
    %2060 = vmatprep.subr.bf16.mxu0 0
    %2061 = vmatpush2.bf16.msra.mxu0 0
    %2062 = vmatprep.subr.bf16.mxu0 0
    %2063 = vmatpush2.bf16.msra.mxu0 0
    %2064 = vmatprep.mubr.bf16.mxu0 0
    %2065 = vmatmul.mubr.bf16.gmra.mxu0 %v1215
    %v2066 = vpop.f32.mrf.mxu0
    %v2067 = vadd.f32 %v688, %v2066
    %v2068 = vpop.f32.mrf.mxu0
    %v2069 = vadd.f32 %v692, %v2068
    %v2070 = vpop.f32.mrf.mxu0
    %v2071 = vpop.f32.mrf.mxu0
    %2072 = vdwg.mxu0
    %2073 = vmatprep.subr.bf16.mxu0 0
    %2074 = vmatpush1.bf16.msra.mxu0 0
    %2075 = vmatprep.subr.bf16.mxu0 0
    %2076 = vmatpush1.bf16.msra.mxu0 0
    %2077 = vmatprep.subr.bf16.mxu0 0
    %2078 = vmatpush1.bf16.msra.mxu0 0
    %2079 = vmatprep.subr.bf16.mxu0 0
    %2080 = vmatpush1.bf16.msra.mxu0 0
    %2081 = vmatprep.subr.bf16.mxu0 0
    %2082 = vmatpush1.bf16.msra.mxu0 0
    %2083 = vmatprep.subr.bf16.mxu0 0
    %2084 = vmatpush1.bf16.msra.mxu0 0
    %2085 = vmatprep.subr.bf16.mxu0 0
    %2086 = vmatpush1.bf16.msra.mxu0 0
    %2087 = vmatprep.subr.bf16.mxu0 %v1312
    %2088 = vmatpush1.bf16.msra.mxu0 %v1309
    %2089 = vmatprep.subr.bf16.mxu0 0
    %2090 = vmatpush2.bf16.msra.mxu0 0
    %2091 = vmatprep.subr.bf16.mxu0 0
    %2092 = vmatpush2.bf16.msra.mxu0 0
    %2093 = vmatprep.subr.bf16.mxu0 0
    %2094 = vmatpush2.bf16.msra.mxu0 0
    %2095 = vmatprep.subr.bf16.mxu0 0
    %2096 = vmatpush2.bf16.msra.mxu0 0
    %2097 = vmatprep.subr.bf16.mxu0 0
    %2098 = vmatpush2.bf16.msra.mxu0 0
    %2099 = vmatprep.subr.bf16.mxu0 0
    %2100 = vmatpush2.bf16.msra.mxu0 0
    %2101 = vmatprep.subr.bf16.mxu0 0
    %2102 = vmatpush2.bf16.msra.mxu0 0
    %2103 = vmatprep.subr.bf16.mxu0 0
    %2104 = vmatpush2.bf16.msra.mxu0 0
    %2105 = vmatprep.mubr.bf16.mxu0 0
    %2106 = vmatmul.mubr.bf16.gmra.mxu0 %v1215
    %v2107 = vpop.f32.mrf.mxu0
    %v2108 = vadd.f32 %v696, %v2107
    %v2109 = vpop.f32.mrf.mxu0
    %v2110 = vadd.f32 %v700, %v2109
    %v2111 = vpop.f32.mrf.mxu0
    %v2112 = vpop.f32.mrf.mxu0
    %2113 = vdwg.mxu0
    %2114 = vmatprep.subr.bf16.mxu0 0
    %2115 = vmatpush1.bf16.msra.mxu0 0
    %2116 = vmatprep.subr.bf16.mxu0 0
    %2117 = vmatpush1.bf16.msra.mxu0 0
    %2118 = vmatprep.subr.bf16.mxu0 0
    %2119 = vmatpush1.bf16.msra.mxu0 0
    %2120 = vmatprep.subr.bf16.mxu0 0
    %2121 = vmatpush1.bf16.msra.mxu0 0
    %2122 = vmatprep.subr.bf16.mxu0 0
    %2123 = vmatpush1.bf16.msra.mxu0 0
    %2124 = vmatprep.subr.bf16.mxu0 0
    %2125 = vmatpush1.bf16.msra.mxu0 0
    %2126 = vmatprep.subr.bf16.mxu0 0
    %2127 = vmatpush1.bf16.msra.mxu0 0
    %2128 = vmatprep.subr.bf16.mxu0 %v1318
    %2129 = vmatpush1.bf16.msra.mxu0 %v1315
    %2130 = vmatprep.subr.bf16.mxu0 0
    %2131 = vmatpush2.bf16.msra.mxu0 0
    %2132 = vmatprep.subr.bf16.mxu0 0
    %2133 = vmatpush2.bf16.msra.mxu0 0
    %2134 = vmatprep.subr.bf16.mxu0 0
    %2135 = vmatpush2.bf16.msra.mxu0 0
    %2136 = vmatprep.subr.bf16.mxu0 0
    %2137 = vmatpush2.bf16.msra.mxu0 0
    %2138 = vmatprep.subr.bf16.mxu0 0
    %2139 = vmatpush2.bf16.msra.mxu0 0
    %2140 = vmatprep.subr.bf16.mxu0 0
    %2141 = vmatpush2.bf16.msra.mxu0 0
    %2142 = vmatprep.subr.bf16.mxu0 0
    %2143 = vmatpush2.bf16.msra.mxu0 0
    %2144 = vmatprep.subr.bf16.mxu0 0
    %2145 = vmatpush2.bf16.msra.mxu0 0
    %2146 = vmatprep.mubr.bf16.mxu0 0
    %2147 = vmatmul.mubr.bf16.gmra.mxu0 %v1215
    %v2148 = vpop.f32.mrf.mxu0
    %v2149 = vadd.f32 %v704, %v2148
    %v2150 = vpop.f32.mrf.mxu0
    %v2151 = vadd.f32 %v708, %v2150
    %v2152 = vpop.f32.mrf.mxu0
    %v2153 = vpop.f32.mrf.mxu0
    %2154 = vdwg.mxu0
    %2155 = vmatprep.subr.bf16.mxu0 0
    %2156 = vmatpush1.bf16.msra.mxu0 0
    %2157 = vmatprep.subr.bf16.mxu0 0
    %2158 = vmatpush1.bf16.msra.mxu0 0
    %2159 = vmatprep.subr.bf16.mxu0 0
    %2160 = vmatpush1.bf16.msra.mxu0 0
    %2161 = vmatprep.subr.bf16.mxu0 0
    %2162 = vmatpush1.bf16.msra.mxu0 0
    %2163 = vmatprep.subr.bf16.mxu0 0
    %2164 = vmatpush1.bf16.msra.mxu0 0
    %2165 = vmatprep.subr.bf16.mxu0 0
    %2166 = vmatpush1.bf16.msra.mxu0 0
    %2167 = vmatprep.subr.bf16.mxu0 0
    %2168 = vmatpush1.bf16.msra.mxu0 0
    %2169 = vmatprep.subr.bf16.mxu0 %v1324
    %2170 = vmatpush1.bf16.msra.mxu0 %v1321
    %2171 = vmatprep.subr.bf16.mxu0 0
    %2172 = vmatpush2.bf16.msra.mxu0 0
    %2173 = vmatprep.subr.bf16.mxu0 0
    %2174 = vmatpush2.bf16.msra.mxu0 0
    %2175 = vmatprep.subr.bf16.mxu0 0
    %2176 = vmatpush2.bf16.msra.mxu0 0
    %2177 = vmatprep.subr.bf16.mxu0 0
    %2178 = vmatpush2.bf16.msra.mxu0 0
    %2179 = vmatprep.subr.bf16.mxu0 0
    %2180 = vmatpush2.bf16.msra.mxu0 0
    %2181 = vmatprep.subr.bf16.mxu0 0
    %2182 = vmatpush2.bf16.msra.mxu0 0
    %2183 = vmatprep.subr.bf16.mxu0 0
    %2184 = vmatpush2.bf16.msra.mxu0 0
    %2185 = vmatprep.subr.bf16.mxu0 0
    %2186 = vmatpush2.bf16.msra.mxu0 0
    %2187 = vmatprep.mubr.bf16.mxu0 0
    %2188 = vmatmul.mubr.bf16.gmra.mxu0 %v1215
    %v2189 = vpop.f32.mrf.mxu0
    %v2190 = vadd.f32 %v712, %v2189
    %v2191 = vpop.f32.mrf.mxu0
    %v2192 = vadd.f32 %v716, %v2191
    %v2193 = vpop.f32.mrf.mxu0
    %v2194 = vpop.f32.mrf.mxu0
    %2195 = vdwg.mxu0
    %2196 = vmatprep.subr.bf16.mxu0 0
    %2197 = vmatpush1.bf16.msra.mxu0 0
    %2198 = vmatprep.subr.bf16.mxu0 0
    %2199 = vmatpush1.bf16.msra.mxu0 0
    %2200 = vmatprep.subr.bf16.mxu0 0
    %2201 = vmatpush1.bf16.msra.mxu0 0
    %2202 = vmatprep.subr.bf16.mxu0 0
    %2203 = vmatpush1.bf16.msra.mxu0 0
    %2204 = vmatprep.subr.bf16.mxu0 0
    %2205 = vmatpush1.bf16.msra.mxu0 0
    %2206 = vmatprep.subr.bf16.mxu0 0
    %2207 = vmatpush1.bf16.msra.mxu0 0
    %2208 = vmatprep.subr.bf16.mxu0 0
    %2209 = vmatpush1.bf16.msra.mxu0 0
    %2210 = vmatprep.subr.bf16.mxu0 %v1330
    %2211 = vmatpush1.bf16.msra.mxu0 %v1327
    %2212 = vmatprep.subr.bf16.mxu0 0
    %2213 = vmatpush2.bf16.msra.mxu0 0
    %2214 = vmatprep.subr.bf16.mxu0 0
    %2215 = vmatpush2.bf16.msra.mxu0 0
    %2216 = vmatprep.subr.bf16.mxu0 0
    %2217 = vmatpush2.bf16.msra.mxu0 0
    %2218 = vmatprep.subr.bf16.mxu0 0
    %2219 = vmatpush2.bf16.msra.mxu0 0
    %2220 = vmatprep.subr.bf16.mxu0 0
    %2221 = vmatpush2.bf16.msra.mxu0 0
    %2222 = vmatprep.subr.bf16.mxu0 0
    %2223 = vmatpush2.bf16.msra.mxu0 0
    %2224 = vmatprep.subr.bf16.mxu0 0
    %2225 = vmatpush2.bf16.msra.mxu0 0
    %2226 = vmatprep.subr.bf16.mxu0 0
    %2227 = vmatpush2.bf16.msra.mxu0 0
    %2228 = vmatprep.mubr.bf16.mxu0 0
    %2229 = vmatmul.mubr.bf16.gmra.mxu0 %v1215
    %v2230 = vpop.f32.mrf.mxu0
    %v2231 = vadd.f32 %v720, %v2230
    %v2232 = vpop.f32.mrf.mxu0
    %v2233 = vadd.f32 %v724, %v2232
    %v2234 = vpop.f32.mrf.mxu0
    %v2235 = vpop.f32.mrf.mxu0
    %2236 = vdwg.mxu0
    %2237 = vmatprep.subr.bf16.mxu0 0
    %2238 = vmatpush1.bf16.msra.mxu0 0
    %2239 = vmatprep.subr.bf16.mxu0 0
    %2240 = vmatpush1.bf16.msra.mxu0 0
    %2241 = vmatprep.subr.bf16.mxu0 0
    %2242 = vmatpush1.bf16.msra.mxu0 0
    %2243 = vmatprep.subr.bf16.mxu0 0
    %2244 = vmatpush1.bf16.msra.mxu0 0
    %2245 = vmatprep.subr.bf16.mxu0 0
    %2246 = vmatpush1.bf16.msra.mxu0 0
    %2247 = vmatprep.subr.bf16.mxu0 0
    %2248 = vmatpush1.bf16.msra.mxu0 0
    %2249 = vmatprep.subr.bf16.mxu0 0
    %2250 = vmatpush1.bf16.msra.mxu0 0
    %2251 = vmatprep.subr.bf16.mxu0 %v1336
    %2252 = vmatpush1.bf16.msra.mxu0 %v1333
    %2253 = vmatprep.subr.bf16.mxu0 0
    %2254 = vmatpush2.bf16.msra.mxu0 0
    %2255 = vmatprep.subr.bf16.mxu0 0
    %2256 = vmatpush2.bf16.msra.mxu0 0
    %2257 = vmatprep.subr.bf16.mxu0 0
    %2258 = vmatpush2.bf16.msra.mxu0 0
    %2259 = vmatprep.subr.bf16.mxu0 0
    %2260 = vmatpush2.bf16.msra.mxu0 0
    %2261 = vmatprep.subr.bf16.mxu0 0
    %2262 = vmatpush2.bf16.msra.mxu0 0
    %2263 = vmatprep.subr.bf16.mxu0 0
    %2264 = vmatpush2.bf16.msra.mxu0 0
    %2265 = vmatprep.subr.bf16.mxu0 0
    %2266 = vmatpush2.bf16.msra.mxu0 0
    %2267 = vmatprep.subr.bf16.mxu0 0
    %2268 = vmatpush2.bf16.msra.mxu0 0
    %2269 = vmatprep.mubr.bf16.mxu0 0
    %2270 = vmatmul.mubr.bf16.gmra.mxu0 %v1215
    %v2271 = vpop.f32.mrf.mxu0
    %v2272 = vadd.f32 %v728, %v2271
    %v2273 = vpop.f32.mrf.mxu0
    %v2274 = vadd.f32 %v732, %v2273
    %v2275 = vpop.f32.mrf.mxu0
    %v2276 = vpop.f32.mrf.mxu0
    %2277 = vdwg.mxu0
    %2278 = vmatprep.subr.bf16.mxu0 0
    %2279 = vmatpush1.bf16.msra.mxu0 0
    %2280 = vmatprep.subr.bf16.mxu0 0
    %2281 = vmatpush1.bf16.msra.mxu0 0
    %2282 = vmatprep.subr.bf16.mxu0 0
    %2283 = vmatpush1.bf16.msra.mxu0 0
    %2284 = vmatprep.subr.bf16.mxu0 0
    %2285 = vmatpush1.bf16.msra.mxu0 0
    %2286 = vmatprep.subr.bf16.mxu0 0
    %2287 = vmatpush1.bf16.msra.mxu0 0
    %2288 = vmatprep.subr.bf16.mxu0 0
    %2289 = vmatpush1.bf16.msra.mxu0 0
    %2290 = vmatprep.subr.bf16.mxu0 0
    %2291 = vmatpush1.bf16.msra.mxu0 0
    %2292 = vmatprep.subr.bf16.mxu0 %v1342
    %2293 = vmatpush1.bf16.msra.mxu0 %v1339
    %2294 = vmatprep.subr.bf16.mxu0 0
    %2295 = vmatpush2.bf16.msra.mxu0 0
    %2296 = vmatprep.subr.bf16.mxu0 0
    %2297 = vmatpush2.bf16.msra.mxu0 0
    %2298 = vmatprep.subr.bf16.mxu0 0
    %2299 = vmatpush2.bf16.msra.mxu0 0
    %2300 = vmatprep.subr.bf16.mxu0 0
    %2301 = vmatpush2.bf16.msra.mxu0 0
    %2302 = vmatprep.subr.bf16.mxu0 0
    %2303 = vmatpush2.bf16.msra.mxu0 0
    %2304 = vmatprep.subr.bf16.mxu0 0
    %2305 = vmatpush2.bf16.msra.mxu0 0
    %2306 = vmatprep.subr.bf16.mxu0 0
    %2307 = vmatpush2.bf16.msra.mxu0 0
    %2308 = vmatprep.subr.bf16.mxu0 0
    %2309 = vmatpush2.bf16.msra.mxu0 0
    %2310 = vmatprep.mubr.bf16.mxu0 0
    %2311 = vmatmul.mubr.bf16.gmra.mxu0 %v1215
    %v2312 = vpop.f32.mrf.mxu0
    %v2313 = vadd.f32 %v736, %v2312
    %v2314 = vpop.f32.mrf.mxu0
    %v2315 = vadd.f32 %v740, %v2314
    %v2316 = vpop.f32.mrf.mxu0
    %v2317 = vpop.f32.mrf.mxu0
    %2318 = vdwg.mxu0
    %2319 = vmatprep.subr.bf16.mxu0 0
    %2320 = vmatpush1.bf16.msra.mxu0 0
    %2321 = vmatprep.subr.bf16.mxu0 0
    %2322 = vmatpush1.bf16.msra.mxu0 0
    %2323 = vmatprep.subr.bf16.mxu0 0
    %2324 = vmatpush1.bf16.msra.mxu0 0
    %2325 = vmatprep.subr.bf16.mxu0 0
    %2326 = vmatpush1.bf16.msra.mxu0 0
    %2327 = vmatprep.subr.bf16.mxu0 0
    %2328 = vmatpush1.bf16.msra.mxu0 0
    %2329 = vmatprep.subr.bf16.mxu0 0
    %2330 = vmatpush1.bf16.msra.mxu0 0
    %2331 = vmatprep.subr.bf16.mxu0 0
    %2332 = vmatpush1.bf16.msra.mxu0 0
    %2333 = vmatprep.subr.bf16.mxu0 %v1348
    %2334 = vmatpush1.bf16.msra.mxu0 %v1345
    %2335 = vmatprep.subr.bf16.mxu0 0
    %2336 = vmatpush2.bf16.msra.mxu0 0
    %2337 = vmatprep.subr.bf16.mxu0 0
    %2338 = vmatpush2.bf16.msra.mxu0 0
    %2339 = vmatprep.subr.bf16.mxu0 0
    %2340 = vmatpush2.bf16.msra.mxu0 0
    %2341 = vmatprep.subr.bf16.mxu0 0
    %2342 = vmatpush2.bf16.msra.mxu0 0
    %2343 = vmatprep.subr.bf16.mxu0 0
    %2344 = vmatpush2.bf16.msra.mxu0 0
    %2345 = vmatprep.subr.bf16.mxu0 0
    %2346 = vmatpush2.bf16.msra.mxu0 0
    %2347 = vmatprep.subr.bf16.mxu0 0
    %2348 = vmatpush2.bf16.msra.mxu0 0
    %2349 = vmatprep.subr.bf16.mxu0 0
    %2350 = vmatpush2.bf16.msra.mxu0 0
    %2351 = vmatprep.mubr.bf16.mxu0 0
    %2352 = vmatmul.mubr.bf16.gmra.mxu0 %v1215
    %v2353 = vpop.f32.mrf.mxu0
    %v2354 = vadd.f32 %v744, %v2353
    %v2355 = vpop.f32.mrf.mxu0
    %v2356 = vadd.f32 %v748, %v2355
    %v2357 = vpop.f32.mrf.mxu0
    %v2358 = vpop.f32.mrf.mxu0
    %2359 = vdwg.mxu0
    %2360 = vmatprep.subr.bf16.mxu0 0
    %2361 = vmatpush1.bf16.msra.mxu0 0
    %2362 = vmatprep.subr.bf16.mxu0 0
    %2363 = vmatpush1.bf16.msra.mxu0 0
    %2364 = vmatprep.subr.bf16.mxu0 0
    %2365 = vmatpush1.bf16.msra.mxu0 0
    %2366 = vmatprep.subr.bf16.mxu0 0
    %2367 = vmatpush1.bf16.msra.mxu0 0
    %2368 = vmatprep.subr.bf16.mxu0 0
    %2369 = vmatpush1.bf16.msra.mxu0 0
    %2370 = vmatprep.subr.bf16.mxu0 0
    %2371 = vmatpush1.bf16.msra.mxu0 0
    %2372 = vmatprep.subr.bf16.mxu0 0
    %2373 = vmatpush1.bf16.msra.mxu0 0
    %2374 = vmatprep.subr.bf16.mxu0 %v1354
    %2375 = vmatpush1.bf16.msra.mxu0 %v1351
    %2376 = vmatprep.subr.bf16.mxu0 0
    %2377 = vmatpush2.bf16.msra.mxu0 0
    %2378 = vmatprep.subr.bf16.mxu0 0
    %2379 = vmatpush2.bf16.msra.mxu0 0
    %2380 = vmatprep.subr.bf16.mxu0 0
    %2381 = vmatpush2.bf16.msra.mxu0 0
    %2382 = vmatprep.subr.bf16.mxu0 0
    %2383 = vmatpush2.bf16.msra.mxu0 0
    %2384 = vmatprep.subr.bf16.mxu0 0
    %2385 = vmatpush2.bf16.msra.mxu0 0
    %2386 = vmatprep.subr.bf16.mxu0 0
    %2387 = vmatpush2.bf16.msra.mxu0 0
    %2388 = vmatprep.subr.bf16.mxu0 0
    %2389 = vmatpush2.bf16.msra.mxu0 0
    %2390 = vmatprep.subr.bf16.mxu0 0
    %2391 = vmatpush2.bf16.msra.mxu0 0
    %2392 = vmatprep.mubr.bf16.mxu0 0
    %2393 = vmatmul.mubr.bf16.gmra.mxu0 %v1215
    %v2394 = vpop.f32.mrf.mxu0
    %v2395 = vadd.f32 %v752, %v2394
    %v2396 = vpop.f32.mrf.mxu0
    %v2397 = vadd.f32 %v756, %v2396
    %v2398 = vpop.f32.mrf.mxu0
    %v2399 = vpop.f32.mrf.mxu0
    %2400 = vdwg.mxu0
    %2401 = vmatprep.subr.bf16.mxu0 0
    %2402 = vmatpush1.bf16.msra.mxu0 0
    %2403 = vmatprep.subr.bf16.mxu0 0
    %2404 = vmatpush1.bf16.msra.mxu0 0
    %2405 = vmatprep.subr.bf16.mxu0 0
    %2406 = vmatpush1.bf16.msra.mxu0 0
    %2407 = vmatprep.subr.bf16.mxu0 0
    %2408 = vmatpush1.bf16.msra.mxu0 0
    %2409 = vmatprep.subr.bf16.mxu0 0
    %2410 = vmatpush1.bf16.msra.mxu0 0
    %2411 = vmatprep.subr.bf16.mxu0 0
    %2412 = vmatpush1.bf16.msra.mxu0 0
    %2413 = vmatprep.subr.bf16.mxu0 0
    %2414 = vmatpush1.bf16.msra.mxu0 0
    %2415 = vmatprep.subr.bf16.mxu0 %v1360
    %2416 = vmatpush1.bf16.msra.mxu0 %v1357
    %2417 = vmatprep.subr.bf16.mxu0 0
    %2418 = vmatpush2.bf16.msra.mxu0 0
    %2419 = vmatprep.subr.bf16.mxu0 0
    %2420 = vmatpush2.bf16.msra.mxu0 0
    %2421 = vmatprep.subr.bf16.mxu0 0
    %2422 = vmatpush2.bf16.msra.mxu0 0
    %2423 = vmatprep.subr.bf16.mxu0 0
    %2424 = vmatpush2.bf16.msra.mxu0 0
    %2425 = vmatprep.subr.bf16.mxu0 0
    %2426 = vmatpush2.bf16.msra.mxu0 0
    %2427 = vmatprep.subr.bf16.mxu0 0
    %2428 = vmatpush2.bf16.msra.mxu0 0
    %2429 = vmatprep.subr.bf16.mxu0 0
    %2430 = vmatpush2.bf16.msra.mxu0 0
    %2431 = vmatprep.subr.bf16.mxu0 0
    %2432 = vmatpush2.bf16.msra.mxu0 0
    %2433 = vmatprep.mubr.bf16.mxu0 0
    %2434 = vmatmul.mubr.bf16.gmra.mxu0 %v1215
    %v2435 = vpop.f32.mrf.mxu0
    %v2436 = vadd.f32 %v760, %v2435
    %v2437 = vpop.f32.mrf.mxu0
    %v2438 = vadd.f32 %v764, %v2437
    %v2439 = vpop.f32.mrf.mxu0
    %v2440 = vpop.f32.mrf.mxu0
    %2441 = vdwg.mxu0
    %2442 = vmatprep.subr.bf16.mxu0 0
    %2443 = vmatpush1.bf16.msra.mxu0 0
    %2444 = vmatprep.subr.bf16.mxu0 0
    %2445 = vmatpush1.bf16.msra.mxu0 0
    %2446 = vmatprep.subr.bf16.mxu0 0
    %2447 = vmatpush1.bf16.msra.mxu0 0
    %2448 = vmatprep.subr.bf16.mxu0 0
    %2449 = vmatpush1.bf16.msra.mxu0 0
    %2450 = vmatprep.subr.bf16.mxu0 0
    %2451 = vmatpush1.bf16.msra.mxu0 0
    %2452 = vmatprep.subr.bf16.mxu0 0
    %2453 = vmatpush1.bf16.msra.mxu0 0
    %2454 = vmatprep.subr.bf16.mxu0 0
    %2455 = vmatpush1.bf16.msra.mxu0 0
    %2456 = vmatprep.subr.bf16.mxu0 %v1366
    %2457 = vmatpush1.bf16.msra.mxu0 %v1363
    %2458 = vmatprep.subr.bf16.mxu0 0
    %2459 = vmatpush2.bf16.msra.mxu0 0
    %2460 = vmatprep.subr.bf16.mxu0 0
    %2461 = vmatpush2.bf16.msra.mxu0 0
    %2462 = vmatprep.subr.bf16.mxu0 0
    %2463 = vmatpush2.bf16.msra.mxu0 0
    %2464 = vmatprep.subr.bf16.mxu0 0
    %2465 = vmatpush2.bf16.msra.mxu0 0
    %2466 = vmatprep.subr.bf16.mxu0 0
    %2467 = vmatpush2.bf16.msra.mxu0 0
    %2468 = vmatprep.subr.bf16.mxu0 0
    %2469 = vmatpush2.bf16.msra.mxu0 0
    %2470 = vmatprep.subr.bf16.mxu0 0
    %2471 = vmatpush2.bf16.msra.mxu0 0
    %2472 = vmatprep.subr.bf16.mxu0 0
    %2473 = vmatpush2.bf16.msra.mxu0 0
    %2474 = vmatprep.mubr.bf16.mxu0 0
    %2475 = vmatmul.mubr.bf16.gmra.mxu0 %v1215
    %v2476 = vpop.f32.mrf.mxu0
    %v2477 = vadd.f32 %v768, %v2476
    %v2478 = vpop.f32.mrf.mxu0
    %v2479 = vadd.f32 %v772, %v2478
    %v2480 = vpop.f32.mrf.mxu0
    %v2481 = vpop.f32.mrf.mxu0
    %2482 = vdwg.mxu0
    %2483 = vmatprep.subr.bf16.mxu0 0
    %2484 = vmatpush1.bf16.msra.mxu0 0
    %2485 = vmatprep.subr.bf16.mxu0 0
    %2486 = vmatpush1.bf16.msra.mxu0 0
    %2487 = vmatprep.subr.bf16.mxu0 0
    %2488 = vmatpush1.bf16.msra.mxu0 0
    %2489 = vmatprep.subr.bf16.mxu0 0
    %2490 = vmatpush1.bf16.msra.mxu0 0
    %2491 = vmatprep.subr.bf16.mxu0 0
    %2492 = vmatpush1.bf16.msra.mxu0 0
    %2493 = vmatprep.subr.bf16.mxu0 0
    %2494 = vmatpush1.bf16.msra.mxu0 0
    %2495 = vmatprep.subr.bf16.mxu0 0
    %2496 = vmatpush1.bf16.msra.mxu0 0
    %2497 = vmatprep.subr.bf16.mxu0 %v1372
    %2498 = vmatpush1.bf16.msra.mxu0 %v1369
    %2499 = vmatprep.subr.bf16.mxu0 0
    %2500 = vmatpush2.bf16.msra.mxu0 0
    %2501 = vmatprep.subr.bf16.mxu0 0
    %2502 = vmatpush2.bf16.msra.mxu0 0
    %2503 = vmatprep.subr.bf16.mxu0 0
    %2504 = vmatpush2.bf16.msra.mxu0 0
    %2505 = vmatprep.subr.bf16.mxu0 0
    %2506 = vmatpush2.bf16.msra.mxu0 0
    %2507 = vmatprep.subr.bf16.mxu0 0
    %2508 = vmatpush2.bf16.msra.mxu0 0
    %2509 = vmatprep.subr.bf16.mxu0 0
    %2510 = vmatpush2.bf16.msra.mxu0 0
    %2511 = vmatprep.subr.bf16.mxu0 0
    %2512 = vmatpush2.bf16.msra.mxu0 0
    %2513 = vmatprep.subr.bf16.mxu0 0
    %2514 = vmatpush2.bf16.msra.mxu0 0
    %2515 = vmatprep.mubr.bf16.mxu0 0
    %2516 = vmatmul.mubr.bf16.gmra.mxu0 %v1215
    %v2517 = vpop.f32.mrf.mxu0
    %v2518 = vadd.f32 %v776, %v2517
    %v2519 = vpop.f32.mrf.mxu0
    %v2520 = vadd.f32 %v780, %v2519
    %v2521 = vpop.f32.mrf.mxu0
    %v2522 = vpop.f32.mrf.mxu0
    %2523 = vdwg.mxu0
    %2524 = vmatprep.subr.bf16.mxu0 0
    %2525 = vmatpush1.bf16.msra.mxu0 0
    %2526 = vmatprep.subr.bf16.mxu0 0
    %2527 = vmatpush1.bf16.msra.mxu0 0
    %2528 = vmatprep.subr.bf16.mxu0 0
    %2529 = vmatpush1.bf16.msra.mxu0 0
    %2530 = vmatprep.subr.bf16.mxu0 0
    %2531 = vmatpush1.bf16.msra.mxu0 0
    %2532 = vmatprep.subr.bf16.mxu0 0
    %2533 = vmatpush1.bf16.msra.mxu0 0
    %2534 = vmatprep.subr.bf16.mxu0 0
    %2535 = vmatpush1.bf16.msra.mxu0 0
    %2536 = vmatprep.subr.bf16.mxu0 0
    %2537 = vmatpush1.bf16.msra.mxu0 0
    %2538 = vmatprep.subr.bf16.mxu0 %v1378
    %2539 = vmatpush1.bf16.msra.mxu0 %v1375
    %2540 = vmatprep.subr.bf16.mxu0 0
    %2541 = vmatpush2.bf16.msra.mxu0 0
    %2542 = vmatprep.subr.bf16.mxu0 0
    %2543 = vmatpush2.bf16.msra.mxu0 0
    %2544 = vmatprep.subr.bf16.mxu0 0
    %2545 = vmatpush2.bf16.msra.mxu0 0
    %2546 = vmatprep.subr.bf16.mxu0 0
    %2547 = vmatpush2.bf16.msra.mxu0 0
    %2548 = vmatprep.subr.bf16.mxu0 0
    %2549 = vmatpush2.bf16.msra.mxu0 0
    %2550 = vmatprep.subr.bf16.mxu0 0
    %2551 = vmatpush2.bf16.msra.mxu0 0
    %2552 = vmatprep.subr.bf16.mxu0 0
    %2553 = vmatpush2.bf16.msra.mxu0 0
    %2554 = vmatprep.subr.bf16.mxu0 0
    %2555 = vmatpush2.bf16.msra.mxu0 0
    %2556 = vmatprep.mubr.bf16.mxu0 0
    %2557 = vmatmul.mubr.bf16.gmra.mxu0 %v1215
    %v2558 = vpop.f32.mrf.mxu0
    %v2559 = vadd.f32 %v784, %v2558
    %v2560 = vpop.f32.mrf.mxu0
    %v2561 = vadd.f32 %v788, %v2560
    %v2562 = vpop.f32.mrf.mxu0
    %v2563 = vpop.f32.mrf.mxu0
    %2564 = vdwg.mxu0
    %2565 = vmatprep.subr.bf16.mxu0 0
    %2566 = vmatpush1.bf16.msra.mxu0 0
    %2567 = vmatprep.subr.bf16.mxu0 0
    %2568 = vmatpush1.bf16.msra.mxu0 0
    %2569 = vmatprep.subr.bf16.mxu0 0
    %2570 = vmatpush1.bf16.msra.mxu0 0
    %2571 = vmatprep.subr.bf16.mxu0 0
    %2572 = vmatpush1.bf16.msra.mxu0 0
    %2573 = vmatprep.subr.bf16.mxu0 0
    %2574 = vmatpush1.bf16.msra.mxu0 0
    %2575 = vmatprep.subr.bf16.mxu0 0
    %2576 = vmatpush1.bf16.msra.mxu0 0
    %2577 = vmatprep.subr.bf16.mxu0 0
    %2578 = vmatpush1.bf16.msra.mxu0 0
    %2579 = vmatprep.subr.bf16.mxu0 %v1384
    %2580 = vmatpush1.bf16.msra.mxu0 %v1381
    %2581 = vmatprep.subr.bf16.mxu0 0
    %2582 = vmatpush2.bf16.msra.mxu0 0
    %2583 = vmatprep.subr.bf16.mxu0 0
    %2584 = vmatpush2.bf16.msra.mxu0 0
    %2585 = vmatprep.subr.bf16.mxu0 0
    %2586 = vmatpush2.bf16.msra.mxu0 0
    %2587 = vmatprep.subr.bf16.mxu0 0
    %2588 = vmatpush2.bf16.msra.mxu0 0
    %2589 = vmatprep.subr.bf16.mxu0 0
    %2590 = vmatpush2.bf16.msra.mxu0 0
    %2591 = vmatprep.subr.bf16.mxu0 0
    %2592 = vmatpush2.bf16.msra.mxu0 0
    %2593 = vmatprep.subr.bf16.mxu0 0
    %2594 = vmatpush2.bf16.msra.mxu0 0
    %2595 = vmatprep.subr.bf16.mxu0 0
    %2596 = vmatpush2.bf16.msra.mxu0 0
    %2597 = vmatprep.mubr.bf16.mxu0 0
    %2598 = vmatmul.mubr.bf16.gmra.mxu0 %v1215
    %v2599 = vpop.f32.mrf.mxu0
    %v2600 = vadd.f32 %v792, %v2599
    %v2601 = vpop.f32.mrf.mxu0
    %v2602 = vadd.f32 %v796, %v2601
    %v2603 = vpop.f32.mrf.mxu0
    %v2604 = vpop.f32.mrf.mxu0
    %2605 = vdwg.mxu0
    %2606 = vmatprep.subr.bf16.mxu0 0
    %2607 = vmatpush1.bf16.msra.mxu0 0
    %2608 = vmatprep.subr.bf16.mxu0 0
    %2609 = vmatpush1.bf16.msra.mxu0 0
    %2610 = vmatprep.subr.bf16.mxu0 0
    %2611 = vmatpush1.bf16.msra.mxu0 0
    %2612 = vmatprep.subr.bf16.mxu0 0
    %2613 = vmatpush1.bf16.msra.mxu0 0
    %2614 = vmatprep.subr.bf16.mxu0 0
    %2615 = vmatpush1.bf16.msra.mxu0 0
    %2616 = vmatprep.subr.bf16.mxu0 0
    %2617 = vmatpush1.bf16.msra.mxu0 0
    %2618 = vmatprep.subr.bf16.mxu0 0
    %2619 = vmatpush1.bf16.msra.mxu0 0
    %2620 = vmatprep.subr.bf16.mxu0 %v1390
    %2621 = vmatpush1.bf16.msra.mxu0 %v1387
    %2622 = vmatprep.subr.bf16.mxu0 0
    %2623 = vmatpush2.bf16.msra.mxu0 0
    %2624 = vmatprep.subr.bf16.mxu0 0
    %2625 = vmatpush2.bf16.msra.mxu0 0
    %2626 = vmatprep.subr.bf16.mxu0 0
    %2627 = vmatpush2.bf16.msra.mxu0 0
    %2628 = vmatprep.subr.bf16.mxu0 0
    %2629 = vmatpush2.bf16.msra.mxu0 0
    %2630 = vmatprep.subr.bf16.mxu0 0
    %2631 = vmatpush2.bf16.msra.mxu0 0
    %2632 = vmatprep.subr.bf16.mxu0 0
    %2633 = vmatpush2.bf16.msra.mxu0 0
    %2634 = vmatprep.subr.bf16.mxu0 0
    %2635 = vmatpush2.bf16.msra.mxu0 0
    %2636 = vmatprep.subr.bf16.mxu0 0
    %2637 = vmatpush2.bf16.msra.mxu0 0
    %2638 = vmatprep.mubr.bf16.mxu0 0
    %2639 = vmatmul.mubr.bf16.gmra.mxu0 %v1215
    %v2640 = vpop.f32.mrf.mxu0
    %v2641 = vadd.f32 %v800, %v2640
    %v2642 = vpop.f32.mrf.mxu0
    %v2643 = vadd.f32 %v804, %v2642
    %v2644 = vpop.f32.mrf.mxu0
    %v2645 = vpop.f32.mrf.mxu0
    %2646 = vdwg.mxu0
    %2647 = vmatprep.subr.bf16.mxu0 0
    %2648 = vmatpush1.bf16.msra.mxu0 0
    %2649 = vmatprep.subr.bf16.mxu0 0
    %2650 = vmatpush1.bf16.msra.mxu0 0
    %2651 = vmatprep.subr.bf16.mxu0 0
    %2652 = vmatpush1.bf16.msra.mxu0 0
    %2653 = vmatprep.subr.bf16.mxu0 0
    %2654 = vmatpush1.bf16.msra.mxu0 0
    %2655 = vmatprep.subr.bf16.mxu0 0
    %2656 = vmatpush1.bf16.msra.mxu0 0
    %2657 = vmatprep.subr.bf16.mxu0 0
    %2658 = vmatpush1.bf16.msra.mxu0 0
    %2659 = vmatprep.subr.bf16.mxu0 0
    %2660 = vmatpush1.bf16.msra.mxu0 0
    %2661 = vmatprep.subr.bf16.mxu0 %v1396
    %2662 = vmatpush1.bf16.msra.mxu0 %v1393
    %2663 = vmatprep.subr.bf16.mxu0 0
    %2664 = vmatpush2.bf16.msra.mxu0 0
    %2665 = vmatprep.subr.bf16.mxu0 0
    %2666 = vmatpush2.bf16.msra.mxu0 0
    %2667 = vmatprep.subr.bf16.mxu0 0
    %2668 = vmatpush2.bf16.msra.mxu0 0
    %2669 = vmatprep.subr.bf16.mxu0 0
    %2670 = vmatpush2.bf16.msra.mxu0 0
    %2671 = vmatprep.subr.bf16.mxu0 0
    %2672 = vmatpush2.bf16.msra.mxu0 0
    %2673 = vmatprep.subr.bf16.mxu0 0
    %2674 = vmatpush2.bf16.msra.mxu0 0
    %2675 = vmatprep.subr.bf16.mxu0 0
    %2676 = vmatpush2.bf16.msra.mxu0 0
    %2677 = vmatprep.subr.bf16.mxu0 0
    %2678 = vmatpush2.bf16.msra.mxu0 0
    %2679 = vmatprep.mubr.bf16.mxu0 0
    %2680 = vmatmul.mubr.bf16.gmra.mxu0 %v1215
    %v2681 = vpop.f32.mrf.mxu0
    %v2682 = vadd.f32 %v808, %v2681
    %v2683 = vpop.f32.mrf.mxu0
    %v2684 = vadd.f32 %v812, %v2683
    %v2685 = vpop.f32.mrf.mxu0
    %v2686 = vpop.f32.mrf.mxu0
    %2687 = vdwg.mxu0
    %2688 = vmatprep.subr.bf16.mxu0 0
    %2689 = vmatpush1.bf16.msra.mxu0 0
    %2690 = vmatprep.subr.bf16.mxu0 0
    %2691 = vmatpush1.bf16.msra.mxu0 0
    %2692 = vmatprep.subr.bf16.mxu0 0
    %2693 = vmatpush1.bf16.msra.mxu0 0
    %2694 = vmatprep.subr.bf16.mxu0 0
    %2695 = vmatpush1.bf16.msra.mxu0 0
    %2696 = vmatprep.subr.bf16.mxu0 0
    %2697 = vmatpush1.bf16.msra.mxu0 0
    %2698 = vmatprep.subr.bf16.mxu0 0
    %2699 = vmatpush1.bf16.msra.mxu0 0
    %2700 = vmatprep.subr.bf16.mxu0 0
    %2701 = vmatpush1.bf16.msra.mxu0 0
    %2702 = vmatprep.subr.bf16.mxu0 %v1402
    %2703 = vmatpush1.bf16.msra.mxu0 %v1399
    %2704 = vmatprep.subr.bf16.mxu0 0
    %2705 = vmatpush2.bf16.msra.mxu0 0
    %2706 = vmatprep.subr.bf16.mxu0 0
    %2707 = vmatpush2.bf16.msra.mxu0 0
    %2708 = vmatprep.subr.bf16.mxu0 0
    %2709 = vmatpush2.bf16.msra.mxu0 0
    %2710 = vmatprep.subr.bf16.mxu0 0
    %2711 = vmatpush2.bf16.msra.mxu0 0
    %2712 = vmatprep.subr.bf16.mxu0 0
    %2713 = vmatpush2.bf16.msra.mxu0 0
    %2714 = vmatprep.subr.bf16.mxu0 0
    %2715 = vmatpush2.bf16.msra.mxu0 0
    %2716 = vmatprep.subr.bf16.mxu0 0
    %2717 = vmatpush2.bf16.msra.mxu0 0
    %2718 = vmatprep.subr.bf16.mxu0 0
    %2719 = vmatpush2.bf16.msra.mxu0 0
    %2720 = vmatprep.mubr.bf16.mxu0 0
    %2721 = vmatmul.mubr.bf16.gmra.mxu0 %v1215
    %v2722 = vpop.f32.mrf.mxu0
    %v2723 = vadd.f32 %v816, %v2722
    %v2724 = vpop.f32.mrf.mxu0
    %v2725 = vadd.f32 %v820, %v2724
    %v2726 = vpop.f32.mrf.mxu0
    %v2727 = vpop.f32.mrf.mxu0
    %2728 = vdwg.mxu0
    %2729 = vmatprep.subr.bf16.mxu0 0
    %2730 = vmatpush1.bf16.msra.mxu0 0
    %2731 = vmatprep.subr.bf16.mxu0 0
    %2732 = vmatpush1.bf16.msra.mxu0 0
    %2733 = vmatprep.subr.bf16.mxu0 0
    %2734 = vmatpush1.bf16.msra.mxu0 0
    %2735 = vmatprep.subr.bf16.mxu0 0
    %2736 = vmatpush1.bf16.msra.mxu0 0
    %2737 = vmatprep.subr.bf16.mxu0 0
    %2738 = vmatpush1.bf16.msra.mxu0 0
    %2739 = vmatprep.subr.bf16.mxu0 0
    %2740 = vmatpush1.bf16.msra.mxu0 0
    %2741 = vmatprep.subr.bf16.mxu0 0
    %2742 = vmatpush1.bf16.msra.mxu0 0
    %2743 = vmatprep.subr.bf16.mxu0 %v1408
    %2744 = vmatpush1.bf16.msra.mxu0 %v1405
    %2745 = vmatprep.subr.bf16.mxu0 0
    %2746 = vmatpush2.bf16.msra.mxu0 0
    %2747 = vmatprep.subr.bf16.mxu0 0
    %2748 = vmatpush2.bf16.msra.mxu0 0
    %2749 = vmatprep.subr.bf16.mxu0 0
    %2750 = vmatpush2.bf16.msra.mxu0 0
    %2751 = vmatprep.subr.bf16.mxu0 0
    %2752 = vmatpush2.bf16.msra.mxu0 0
    %2753 = vmatprep.subr.bf16.mxu0 0
    %2754 = vmatpush2.bf16.msra.mxu0 0
    %2755 = vmatprep.subr.bf16.mxu0 0
    %2756 = vmatpush2.bf16.msra.mxu0 0
    %2757 = vmatprep.subr.bf16.mxu0 0
    %2758 = vmatpush2.bf16.msra.mxu0 0
    %2759 = vmatprep.subr.bf16.mxu0 0
    %2760 = vmatpush2.bf16.msra.mxu0 0
    %2761 = vmatprep.mubr.bf16.mxu0 0
    %2762 = vmatmul.mubr.bf16.gmra.mxu0 %v1215
    %v2763 = vpop.f32.mrf.mxu0
    %v2764 = vadd.f32 %v824, %v2763
    %v2765 = vpop.f32.mrf.mxu0
    %v2766 = vadd.f32 %v828, %v2765
    %v2767 = vpop.f32.mrf.mxu0
    %v2768 = vpop.f32.mrf.mxu0
    %2769 = vdwg.mxu0
    %2770 = vmatprep.subr.bf16.mxu0 0
    %2771 = vmatpush1.bf16.msra.mxu0 0
    %2772 = vmatprep.subr.bf16.mxu0 0
    %2773 = vmatpush1.bf16.msra.mxu0 0
    %2774 = vmatprep.subr.bf16.mxu0 0
    %2775 = vmatpush1.bf16.msra.mxu0 0
    %2776 = vmatprep.subr.bf16.mxu0 0
    %2777 = vmatpush1.bf16.msra.mxu0 0
    %2778 = vmatprep.subr.bf16.mxu0 0
    %2779 = vmatpush1.bf16.msra.mxu0 0
    %2780 = vmatprep.subr.bf16.mxu0 0
    %2781 = vmatpush1.bf16.msra.mxu0 0
    %2782 = vmatprep.subr.bf16.mxu0 0
    %2783 = vmatpush1.bf16.msra.mxu0 0
    %2784 = vmatprep.subr.bf16.mxu0 %v1414
    %2785 = vmatpush1.bf16.msra.mxu0 %v1411
    %2786 = vmatprep.subr.bf16.mxu0 0
    %2787 = vmatpush2.bf16.msra.mxu0 0
    %2788 = vmatprep.subr.bf16.mxu0 0
    %2789 = vmatpush2.bf16.msra.mxu0 0
    %2790 = vmatprep.subr.bf16.mxu0 0
    %2791 = vmatpush2.bf16.msra.mxu0 0
    %2792 = vmatprep.subr.bf16.mxu0 0
    %2793 = vmatpush2.bf16.msra.mxu0 0
    %2794 = vmatprep.subr.bf16.mxu0 0
    %2795 = vmatpush2.bf16.msra.mxu0 0
    %2796 = vmatprep.subr.bf16.mxu0 0
    %2797 = vmatpush2.bf16.msra.mxu0 0
    %2798 = vmatprep.subr.bf16.mxu0 0
    %2799 = vmatpush2.bf16.msra.mxu0 0
    %2800 = vmatprep.subr.bf16.mxu0 0
    %2801 = vmatpush2.bf16.msra.mxu0 0
    %2802 = vmatprep.mubr.bf16.mxu0 0
    %2803 = vmatmul.mubr.bf16.gmra.mxu0 %v1215
    %v2804 = vpop.f32.mrf.mxu0
    %v2805 = vadd.f32 %v832, %v2804
    %v2806 = vpop.f32.mrf.mxu0
    %v2807 = vadd.f32 %v836, %v2806
    %v2808 = vpop.f32.mrf.mxu0
    %v2809 = vpop.f32.mrf.mxu0
    %2810 = vdwg.mxu0
    %2811 = vmatprep.subr.bf16.mxu0 0
    %2812 = vmatpush1.bf16.msra.mxu0 0
    %2813 = vmatprep.subr.bf16.mxu0 0
    %2814 = vmatpush1.bf16.msra.mxu0 0
    %2815 = vmatprep.subr.bf16.mxu0 0
    %2816 = vmatpush1.bf16.msra.mxu0 0
    %2817 = vmatprep.subr.bf16.mxu0 0
    %2818 = vmatpush1.bf16.msra.mxu0 0
    %2819 = vmatprep.subr.bf16.mxu0 0
    %2820 = vmatpush1.bf16.msra.mxu0 0
    %2821 = vmatprep.subr.bf16.mxu0 0
    %2822 = vmatpush1.bf16.msra.mxu0 0
    %2823 = vmatprep.subr.bf16.mxu0 0
    %2824 = vmatpush1.bf16.msra.mxu0 0
    %2825 = vmatprep.subr.bf16.mxu0 %v1420
    %2826 = vmatpush1.bf16.msra.mxu0 %v1417
    %2827 = vmatprep.subr.bf16.mxu0 0
    %2828 = vmatpush2.bf16.msra.mxu0 0
    %2829 = vmatprep.subr.bf16.mxu0 0
    %2830 = vmatpush2.bf16.msra.mxu0 0
    %2831 = vmatprep.subr.bf16.mxu0 0
    %2832 = vmatpush2.bf16.msra.mxu0 0
    %2833 = vmatprep.subr.bf16.mxu0 0
    %2834 = vmatpush2.bf16.msra.mxu0 0
    %2835 = vmatprep.subr.bf16.mxu0 0
    %2836 = vmatpush2.bf16.msra.mxu0 0
    %2837 = vmatprep.subr.bf16.mxu0 0
    %2838 = vmatpush2.bf16.msra.mxu0 0
    %2839 = vmatprep.subr.bf16.mxu0 0
    %2840 = vmatpush2.bf16.msra.mxu0 0
    %2841 = vmatprep.subr.bf16.mxu0 0
    %2842 = vmatpush2.bf16.msra.mxu0 0
    %2843 = vmatprep.mubr.bf16.mxu0 0
    %2844 = vmatmul.mubr.bf16.gmra.mxu0 %v1215
    %v2845 = vpop.f32.mrf.mxu0
    %v2846 = vadd.f32 %v840, %v2845
    %v2847 = vpop.f32.mrf.mxu0
    %v2848 = vadd.f32 %v844, %v2847
    %v2849 = vpop.f32.mrf.mxu0
    %v2850 = vpop.f32.mrf.mxu0
    %2851 = vdwg.mxu0
    %2852 = vmatprep.subr.bf16.mxu0 0
    %2853 = vmatpush1.bf16.msra.mxu0 0
    %2854 = vmatprep.subr.bf16.mxu0 0
    %2855 = vmatpush1.bf16.msra.mxu0 0
    %2856 = vmatprep.subr.bf16.mxu0 0
    %2857 = vmatpush1.bf16.msra.mxu0 0
    %2858 = vmatprep.subr.bf16.mxu0 0
    %2859 = vmatpush1.bf16.msra.mxu0 0
    %2860 = vmatprep.subr.bf16.mxu0 0
    %2861 = vmatpush1.bf16.msra.mxu0 0
    %2862 = vmatprep.subr.bf16.mxu0 0
    %2863 = vmatpush1.bf16.msra.mxu0 0
    %2864 = vmatprep.subr.bf16.mxu0 0
    %2865 = vmatpush1.bf16.msra.mxu0 0
    %2866 = vmatprep.subr.bf16.mxu0 %v1426
    %2867 = vmatpush1.bf16.msra.mxu0 %v1423
    %2868 = vmatprep.subr.bf16.mxu0 0
    %2869 = vmatpush2.bf16.msra.mxu0 0
    %2870 = vmatprep.subr.bf16.mxu0 0
    %2871 = vmatpush2.bf16.msra.mxu0 0
    %2872 = vmatprep.subr.bf16.mxu0 0
    %2873 = vmatpush2.bf16.msra.mxu0 0
    %2874 = vmatprep.subr.bf16.mxu0 0
    %2875 = vmatpush2.bf16.msra.mxu0 0
    %2876 = vmatprep.subr.bf16.mxu0 0
    %2877 = vmatpush2.bf16.msra.mxu0 0
    %2878 = vmatprep.subr.bf16.mxu0 0
    %2879 = vmatpush2.bf16.msra.mxu0 0
    %2880 = vmatprep.subr.bf16.mxu0 0
    %2881 = vmatpush2.bf16.msra.mxu0 0
    %2882 = vmatprep.subr.bf16.mxu0 0
    %2883 = vmatpush2.bf16.msra.mxu0 0
    %2884 = vmatprep.mubr.bf16.mxu0 0
    %2885 = vmatmul.mubr.bf16.gmra.mxu0 %v1215
    %v2886 = vpop.f32.mrf.mxu0
    %v2887 = vadd.f32 %v848, %v2886
    %v2888 = vpop.f32.mrf.mxu0
    %v2889 = vadd.f32 %v852, %v2888
    %v2890 = vpop.f32.mrf.mxu0
    %v2891 = vpop.f32.mrf.mxu0
    %2892 = vdwg.mxu0
    %2893 = vmatprep.subr.bf16.mxu0 0
    %2894 = vmatpush1.bf16.msra.mxu0 0
    %2895 = vmatprep.subr.bf16.mxu0 0
    %2896 = vmatpush1.bf16.msra.mxu0 0
    %2897 = vmatprep.subr.bf16.mxu0 0
    %2898 = vmatpush1.bf16.msra.mxu0 0
    %2899 = vmatprep.subr.bf16.mxu0 0
    %2900 = vmatpush1.bf16.msra.mxu0 0
    %2901 = vmatprep.subr.bf16.mxu0 0
    %2902 = vmatpush1.bf16.msra.mxu0 0
    %2903 = vmatprep.subr.bf16.mxu0 0
    %2904 = vmatpush1.bf16.msra.mxu0 0
    %2905 = vmatprep.subr.bf16.mxu0 0
    %2906 = vmatpush1.bf16.msra.mxu0 0
    %2907 = vmatprep.subr.bf16.mxu0 %v1432
    %2908 = vmatpush1.bf16.msra.mxu0 %v1429
    %2909 = vmatprep.subr.bf16.mxu0 0
    %2910 = vmatpush2.bf16.msra.mxu0 0
    %2911 = vmatprep.subr.bf16.mxu0 0
    %2912 = vmatpush2.bf16.msra.mxu0 0
    %2913 = vmatprep.subr.bf16.mxu0 0
    %2914 = vmatpush2.bf16.msra.mxu0 0
    %2915 = vmatprep.subr.bf16.mxu0 0
    %2916 = vmatpush2.bf16.msra.mxu0 0
    %2917 = vmatprep.subr.bf16.mxu0 0
    %2918 = vmatpush2.bf16.msra.mxu0 0
    %2919 = vmatprep.subr.bf16.mxu0 0
    %2920 = vmatpush2.bf16.msra.mxu0 0
    %2921 = vmatprep.subr.bf16.mxu0 0
    %2922 = vmatpush2.bf16.msra.mxu0 0
    %2923 = vmatprep.subr.bf16.mxu0 0
    %2924 = vmatpush2.bf16.msra.mxu0 0
    %2925 = vmatprep.mubr.bf16.mxu0 0
    %2926 = vmatmul.mubr.bf16.gmra.mxu0 %v1215
    %v2927 = vpop.f32.mrf.mxu0
    %v2928 = vadd.f32 %v856, %v2927
    %v2929 = vpop.f32.mrf.mxu0
    %v2930 = vadd.f32 %v860, %v2929
    %v2931 = vpop.f32.mrf.mxu0
    %v2932 = vpop.f32.mrf.mxu0
    %2933 = vdwg.mxu0
    %2934 = vmatprep.subr.bf16.mxu0 0
    %2935 = vmatpush1.bf16.msra.mxu0 0
    %2936 = vmatprep.subr.bf16.mxu0 0
    %2937 = vmatpush1.bf16.msra.mxu0 0
    %2938 = vmatprep.subr.bf16.mxu0 0
    %2939 = vmatpush1.bf16.msra.mxu0 0
    %2940 = vmatprep.subr.bf16.mxu0 0
    %2941 = vmatpush1.bf16.msra.mxu0 0
    %2942 = vmatprep.subr.bf16.mxu0 0
    %2943 = vmatpush1.bf16.msra.mxu0 0
    %2944 = vmatprep.subr.bf16.mxu0 0
    %2945 = vmatpush1.bf16.msra.mxu0 0
    %2946 = vmatprep.subr.bf16.mxu0 0
    %2947 = vmatpush1.bf16.msra.mxu0 0
    %2948 = vmatprep.subr.bf16.mxu0 %v1438
    %2949 = vmatpush1.bf16.msra.mxu0 %v1435
    %2950 = vmatprep.subr.bf16.mxu0 0
    %2951 = vmatpush2.bf16.msra.mxu0 0
    %2952 = vmatprep.subr.bf16.mxu0 0
    %2953 = vmatpush2.bf16.msra.mxu0 0
    %2954 = vmatprep.subr.bf16.mxu0 0
    %2955 = vmatpush2.bf16.msra.mxu0 0
    %2956 = vmatprep.subr.bf16.mxu0 0
    %2957 = vmatpush2.bf16.msra.mxu0 0
    %2958 = vmatprep.subr.bf16.mxu0 0
    %2959 = vmatpush2.bf16.msra.mxu0 0
    %2960 = vmatprep.subr.bf16.mxu0 0
    %2961 = vmatpush2.bf16.msra.mxu0 0
    %2962 = vmatprep.subr.bf16.mxu0 0
    %2963 = vmatpush2.bf16.msra.mxu0 0
    %2964 = vmatprep.subr.bf16.mxu0 0
    %2965 = vmatpush2.bf16.msra.mxu0 0
    %2966 = vmatprep.mubr.bf16.mxu0 0
    %2967 = vmatmul.mubr.bf16.gmra.mxu0 %v1215
    %v2968 = vpop.f32.mrf.mxu0
    %v2969 = vadd.f32 %v864, %v2968
    %v2970 = vpop.f32.mrf.mxu0
    %v2971 = vadd.f32 %v868, %v2970
    %v2972 = vpop.f32.mrf.mxu0
    %v2973 = vpop.f32.mrf.mxu0
    %2974 = vdwg.mxu0
    %2975 = vmatprep.subr.bf16.mxu0 0
    %2976 = vmatpush1.bf16.msra.mxu0 0
    %2977 = vmatprep.subr.bf16.mxu0 0
    %2978 = vmatpush1.bf16.msra.mxu0 0
    %2979 = vmatprep.subr.bf16.mxu0 0
    %2980 = vmatpush1.bf16.msra.mxu0 0
    %2981 = vmatprep.subr.bf16.mxu0 0
    %2982 = vmatpush1.bf16.msra.mxu0 0
    %2983 = vmatprep.subr.bf16.mxu0 0
    %2984 = vmatpush1.bf16.msra.mxu0 0
    %2985 = vmatprep.subr.bf16.mxu0 0
    %2986 = vmatpush1.bf16.msra.mxu0 0
    %2987 = vmatprep.subr.bf16.mxu0 0
    %2988 = vmatpush1.bf16.msra.mxu0 0
    %2989 = vmatprep.subr.bf16.mxu0 %v1444
    %2990 = vmatpush1.bf16.msra.mxu0 %v1441
    %2991 = vmatprep.subr.bf16.mxu0 0
    %2992 = vmatpush2.bf16.msra.mxu0 0
    %2993 = vmatprep.subr.bf16.mxu0 0
    %2994 = vmatpush2.bf16.msra.mxu0 0
    %2995 = vmatprep.subr.bf16.mxu0 0
    %2996 = vmatpush2.bf16.msra.mxu0 0
    %2997 = vmatprep.subr.bf16.mxu0 0
    %2998 = vmatpush2.bf16.msra.mxu0 0
    %2999 = vmatprep.subr.bf16.mxu0 0
    %3000 = vmatpush2.bf16.msra.mxu0 0
    %3001 = vmatprep.subr.bf16.mxu0 0
    %3002 = vmatpush2.bf16.msra.mxu0 0
    %3003 = vmatprep.subr.bf16.mxu0 0
    %3004 = vmatpush2.bf16.msra.mxu0 0
    %3005 = vmatprep.subr.bf16.mxu0 0
    %3006 = vmatpush2.bf16.msra.mxu0 0
    %3007 = vmatprep.mubr.bf16.mxu0 0
    %3008 = vmatmul.mubr.bf16.gmra.mxu0 %v1215
    %v3009 = vpop.f32.mrf.mxu0
    %v3010 = vadd.f32 %v872, %v3009
    %v3011 = vpop.f32.mrf.mxu0
    %v3012 = vadd.f32 %v876, %v3011
    %v3013 = vpop.f32.mrf.mxu0
    %v3014 = vpop.f32.mrf.mxu0
    %3015 = vdwg.mxu0
    %3016 = vmatprep.subr.bf16.mxu0 0
    %3017 = vmatpush1.bf16.msra.mxu0 0
    %3018 = vmatprep.subr.bf16.mxu0 0
    %3019 = vmatpush1.bf16.msra.mxu0 0
    %3020 = vmatprep.subr.bf16.mxu0 0
    %3021 = vmatpush1.bf16.msra.mxu0 0
    %3022 = vmatprep.subr.bf16.mxu0 0
    %3023 = vmatpush1.bf16.msra.mxu0 0
    %3024 = vmatprep.subr.bf16.mxu0 0
    %3025 = vmatpush1.bf16.msra.mxu0 0
    %3026 = vmatprep.subr.bf16.mxu0 0
    %3027 = vmatpush1.bf16.msra.mxu0 0
    %3028 = vmatprep.subr.bf16.mxu0 0
    %3029 = vmatpush1.bf16.msra.mxu0 0
    %3030 = vmatprep.subr.bf16.mxu0 %v1450
    %3031 = vmatpush1.bf16.msra.mxu0 %v1447
    %3032 = vmatprep.subr.bf16.mxu0 0
    %3033 = vmatpush2.bf16.msra.mxu0 0
    %3034 = vmatprep.subr.bf16.mxu0 0
    %3035 = vmatpush2.bf16.msra.mxu0 0
    %3036 = vmatprep.subr.bf16.mxu0 0
    %3037 = vmatpush2.bf16.msra.mxu0 0
    %3038 = vmatprep.subr.bf16.mxu0 0
    %3039 = vmatpush2.bf16.msra.mxu0 0
    %3040 = vmatprep.subr.bf16.mxu0 0
    %3041 = vmatpush2.bf16.msra.mxu0 0
    %3042 = vmatprep.subr.bf16.mxu0 0
    %3043 = vmatpush2.bf16.msra.mxu0 0
    %3044 = vmatprep.subr.bf16.mxu0 0
    %3045 = vmatpush2.bf16.msra.mxu0 0
    %3046 = vmatprep.subr.bf16.mxu0 0
    %3047 = vmatpush2.bf16.msra.mxu0 0
    %3048 = vmatprep.mubr.bf16.mxu0 0
    %3049 = vmatmul.mubr.bf16.gmra.mxu0 %v1215
    %v3050 = vpop.f32.mrf.mxu0
    %v3051 = vadd.f32 %v880, %v3050
    %v3052 = vpop.f32.mrf.mxu0
    %v3053 = vadd.f32 %v884, %v3052
    %v3054 = vpop.f32.mrf.mxu0
    %v3055 = vpop.f32.mrf.mxu0
    %3056 = vdwg.mxu0
    %3057 = vmatprep.subr.bf16.mxu0 0
    %3058 = vmatpush1.bf16.msra.mxu0 0
    %3059 = vmatprep.subr.bf16.mxu0 0
    %3060 = vmatpush1.bf16.msra.mxu0 0
    %3061 = vmatprep.subr.bf16.mxu0 0
    %3062 = vmatpush1.bf16.msra.mxu0 0
    %3063 = vmatprep.subr.bf16.mxu0 0
    %3064 = vmatpush1.bf16.msra.mxu0 0
    %3065 = vmatprep.subr.bf16.mxu0 0
    %3066 = vmatpush1.bf16.msra.mxu0 0
    %3067 = vmatprep.subr.bf16.mxu0 0
    %3068 = vmatpush1.bf16.msra.mxu0 0
    %3069 = vmatprep.subr.bf16.mxu0 0
    %3070 = vmatpush1.bf16.msra.mxu0 0
    %3071 = vmatprep.subr.bf16.mxu0 %v1456
    %3072 = vmatpush1.bf16.msra.mxu0 %v1453
    %3073 = vmatprep.subr.bf16.mxu0 0
    %3074 = vmatpush2.bf16.msra.mxu0 0
    %3075 = vmatprep.subr.bf16.mxu0 0
    %3076 = vmatpush2.bf16.msra.mxu0 0
    %3077 = vmatprep.subr.bf16.mxu0 0
    %3078 = vmatpush2.bf16.msra.mxu0 0
    %3079 = vmatprep.subr.bf16.mxu0 0
    %3080 = vmatpush2.bf16.msra.mxu0 0
    %3081 = vmatprep.subr.bf16.mxu0 0
    %3082 = vmatpush2.bf16.msra.mxu0 0
    %3083 = vmatprep.subr.bf16.mxu0 0
    %3084 = vmatpush2.bf16.msra.mxu0 0
    %3085 = vmatprep.subr.bf16.mxu0 0
    %3086 = vmatpush2.bf16.msra.mxu0 0
    %3087 = vmatprep.subr.bf16.mxu0 0
    %3088 = vmatpush2.bf16.msra.mxu0 0
    %3089 = vmatprep.mubr.bf16.mxu0 0
    %3090 = vmatmul.mubr.bf16.gmra.mxu0 %v1215
    %v3091 = vpop.f32.mrf.mxu0
    %v3092 = vadd.f32 %v888, %v3091
    %v3093 = vpop.f32.mrf.mxu0
    %v3094 = vadd.f32 %v892, %v3093
    %v3095 = vpop.f32.mrf.mxu0
    %v3096 = vpop.f32.mrf.mxu0
    %3097 = vdwg.mxu0
    %v3098 = vmax.f32 %v1493, 0.0
    %v3099 = vmax.f32 %v1495, 0.0
    %v3100 = vmax.f32 %v1534, 0.0
    %v3101 = vmax.f32 %v1536, 0.0
    %v3102 = vmax.f32 %v1575, 0.0
    %v3103 = vmax.f32 %v1577, 0.0
    %v3104 = vmax.f32 %v1616, 0.0
    %v3105 = vmax.f32 %v1618, 0.0
    %v3106 = vmax.f32 %v1657, 0.0
    %v3107 = vmax.f32 %v1659, 0.0
    %v3108 = vmax.f32 %v1698, 0.0
    %v3109 = vmax.f32 %v1700, 0.0
    %v3110 = vmax.f32 %v1739, 0.0
    %v3111 = vmax.f32 %v1741, 0.0
    %v3112 = vmax.f32 %v1780, 0.0
    %v3113 = vmax.f32 %v1782, 0.0
    %v3114 = vmax.f32 %v1821, 0.0
    %v3115 = vmax.f32 %v1823, 0.0
    %v3116 = vmax.f32 %v1862, 0.0
    %v3117 = vmax.f32 %v1864, 0.0
    %v3118 = vmax.f32 %v1903, 0.0
    %v3119 = vmax.f32 %v1905, 0.0
    %v3120 = vmax.f32 %v1944, 0.0
    %v3121 = vmax.f32 %v1946, 0.0
    %v3122 = vmax.f32 %v1985, 0.0
    %v3123 = vmax.f32 %v1987, 0.0
    %v3124 = vmax.f32 %v2026, 0.0
    %v3125 = vmax.f32 %v2028, 0.0
    %v3126 = vmax.f32 %v2067, 0.0
    %v3127 = vmax.f32 %v2069, 0.0
    %v3128 = vmax.f32 %v2108, 0.0
    %v3129 = vmax.f32 %v2110, 0.0
    %v3130 = vmax.f32 %v2149, 0.0
    %v3131 = vmax.f32 %v2151, 0.0
    %v3132 = vmax.f32 %v2190, 0.0
    %v3133 = vmax.f32 %v2192, 0.0
    %v3134 = vmax.f32 %v2231, 0.0
    %v3135 = vmax.f32 %v2233, 0.0
    %v3136 = vmax.f32 %v2272, 0.0
    %v3137 = vmax.f32 %v2274, 0.0
    %v3138 = vmax.f32 %v2313, 0.0
    %v3139 = vmax.f32 %v2315, 0.0
    %v3140 = vmax.f32 %v2354, 0.0
    %v3141 = vmax.f32 %v2356, 0.0
    %v3142 = vmax.f32 %v2395, 0.0
    %v3143 = vmax.f32 %v2397, 0.0
    %v3144 = vmax.f32 %v2436, 0.0
    %v3145 = vmax.f32 %v2438, 0.0
    %v3146 = vmax.f32 %v2477, 0.0
    %v3147 = vmax.f32 %v2479, 0.0
    %v3148 = vmax.f32 %v2518, 0.0
    %v3149 = vmax.f32 %v2520, 0.0
    %v3150 = vmax.f32 %v2559, 0.0
    %v3151 = vmax.f32 %v2561, 0.0
    %v3152 = vmax.f32 %v2600, 0.0
    %v3153 = vmax.f32 %v2602, 0.0
    %v3154 = vmax.f32 %v2641, 0.0
    %v3155 = vmax.f32 %v2643, 0.0
    %v3156 = vmax.f32 %v2682, 0.0
    %v3157 = vmax.f32 %v2684, 0.0
    %v3158 = vmax.f32 %v2723, 0.0
    %v3159 = vmax.f32 %v2725, 0.0
    %v3160 = vmax.f32 %v2764, 0.0
    %v3161 = vmax.f32 %v2766, 0.0
    %v3162 = vmax.f32 %v2805, 0.0
    %v3163 = vmax.f32 %v2807, 0.0
    %v3164 = vmax.f32 %v2846, 0.0
    %v3165 = vmax.f32 %v2848, 0.0
    %v3166 = vmax.f32 %v2887, 0.0
    %v3167 = vmax.f32 %v2889, 0.0
    %v3168 = vmax.f32 %v2928, 0.0
    %v3169 = vmax.f32 %v2930, 0.0
    %v3170 = vmax.f32 %v2969, 0.0
    %v3171 = vmax.f32 %v2971, 0.0
    %v3172 = vmax.f32 %v3010, 0.0
    %v3173 = vmax.f32 %v3012, 0.0
    %v3174 = vmax.f32 %v3051, 0.0
    %v3175 = vmax.f32 %v3053, 0.0
    %v3176 = vmax.f32 %v3092, 0.0
    %v3177 = vmax.f32 %v3094, 0.0
    %v3258 = vcombine.low %v3098, %v3099
    %v3259 = vcombine.low %v3100, %v3101
    %v3261 = vunpack.c.l.s4 1983009808
    %v3262 = vunpack.c.0.s8 %v3261
    %v3263 = vlaneseq
    %v3264 = vshrl.u32 %v3263, 7
    %v3265 = vsub.s32 %v3262, %v3264
    %v3266 = vrot.slane %v3258, %v3265
    %v3268 = vunpack.c.l.s4 1983009808
    %v3269 = vunpack.c.0.s8 %v3268
    %v3270 = vlaneseq
    %v3271 = vshrl.u32 %v3270, 7
    %v3272 = vsub.s32 %v3269, %v3271
    %v3273 = vrot.slane %v3259, %v3272
    %v3274 = vcombine.low %v3266, %v3273
    %v3275 = vcombine.low %v3102, %v3103
    %v3276 = vcombine.low %v3104, %v3105
    %v3278 = vunpack.c.l.s4 1983009808
    %v3279 = vunpack.c.0.s8 %v3278
    %v3280 = vlaneseq
    %v3281 = vshrl.u32 %v3280, 7
    %v3282 = vsub.s32 %v3279, %v3281
    %v3283 = vrot.slane %v3275, %v3282
    %v3285 = vunpack.c.l.s4 1983009808
    %v3286 = vunpack.c.0.s8 %v3285
    %v3287 = vlaneseq
    %v3288 = vshrl.u32 %v3287, 7
    %v3289 = vsub.s32 %v3286, %v3288
    %v3290 = vrot.slane %v3276, %v3289
    %v3291 = vcombine.low %v3283, %v3290
    %v3292 = vcombine.low %v3106, %v3107
    %v3293 = vcombine.low %v3108, %v3109
    %v3295 = vunpack.c.l.s4 1983009808
    %v3296 = vunpack.c.0.s8 %v3295
    %v3297 = vlaneseq
    %v3298 = vshrl.u32 %v3297, 7
    %v3299 = vsub.s32 %v3296, %v3298
    %v3300 = vrot.slane %v3292, %v3299
    %v3302 = vunpack.c.l.s4 1983009808
    %v3303 = vunpack.c.0.s8 %v3302
    %v3304 = vlaneseq
    %v3305 = vshrl.u32 %v3304, 7
    %v3306 = vsub.s32 %v3303, %v3305
    %v3307 = vrot.slane %v3293, %v3306
    %v3308 = vcombine.low %v3300, %v3307
    %v3309 = vcombine.low %v3110, %v3111
    %v3310 = vcombine.low %v3112, %v3113
    %v3312 = vunpack.c.l.s4 1983009808
    %v3313 = vunpack.c.0.s8 %v3312
    %v3314 = vlaneseq
    %v3315 = vshrl.u32 %v3314, 7
    %v3316 = vsub.s32 %v3313, %v3315
    %v3317 = vrot.slane %v3309, %v3316
    %v3319 = vunpack.c.l.s4 1983009808
    %v3320 = vunpack.c.0.s8 %v3319
    %v3321 = vlaneseq
    %v3322 = vshrl.u32 %v3321, 7
    %v3323 = vsub.s32 %v3320, %v3322
    %v3324 = vrot.slane %v3310, %v3323
    %v3325 = vcombine.low %v3317, %v3324
    %v3326 = vcombine.low %v3114, %v3115
    %v3327 = vcombine.low %v3116, %v3117
    %v3329 = vunpack.c.l.s4 1983009808
    %v3330 = vunpack.c.0.s8 %v3329
    %v3331 = vlaneseq
    %v3332 = vshrl.u32 %v3331, 7
    %v3333 = vsub.s32 %v3330, %v3332
    %v3334 = vrot.slane %v3326, %v3333
    %v3336 = vunpack.c.l.s4 1983009808
    %v3337 = vunpack.c.0.s8 %v3336
    %v3338 = vlaneseq
    %v3339 = vshrl.u32 %v3338, 7
    %v3340 = vsub.s32 %v3337, %v3339
    %v3341 = vrot.slane %v3327, %v3340
    %v3342 = vcombine.low %v3334, %v3341
    %v3343 = vcombine.low %v3118, %v3119
    %v3344 = vcombine.low %v3120, %v3121
    %v3346 = vunpack.c.l.s4 1983009808
    %v3347 = vunpack.c.0.s8 %v3346
    %v3348 = vlaneseq
    %v3349 = vshrl.u32 %v3348, 7
    %v3350 = vsub.s32 %v3347, %v3349
    %v3351 = vrot.slane %v3343, %v3350
    %v3353 = vunpack.c.l.s4 1983009808
    %v3354 = vunpack.c.0.s8 %v3353
    %v3355 = vlaneseq
    %v3356 = vshrl.u32 %v3355, 7
    %v3357 = vsub.s32 %v3354, %v3356
    %v3358 = vrot.slane %v3344, %v3357
    %v3359 = vcombine.low %v3351, %v3358
    %v3360 = vcombine.low %v3122, %v3123
    %v3361 = vcombine.low %v3124, %v3125
    %v3363 = vunpack.c.l.s4 1983009808
    %v3364 = vunpack.c.0.s8 %v3363
    %v3365 = vlaneseq
    %v3366 = vshrl.u32 %v3365, 7
    %v3367 = vsub.s32 %v3364, %v3366
    %v3368 = vrot.slane %v3360, %v3367
    %v3370 = vunpack.c.l.s4 1983009808
    %v3371 = vunpack.c.0.s8 %v3370
    %v3372 = vlaneseq
    %v3373 = vshrl.u32 %v3372, 7
    %v3374 = vsub.s32 %v3371, %v3373
    %v3375 = vrot.slane %v3361, %v3374
    %v3376 = vcombine.low %v3368, %v3375
    %v3377 = vcombine.low %v3126, %v3127
    %v3378 = vcombine.low %v3128, %v3129
    %v3380 = vunpack.c.l.s4 1983009808
    %v3381 = vunpack.c.0.s8 %v3380
    %v3382 = vlaneseq
    %v3383 = vshrl.u32 %v3382, 7
    %v3384 = vsub.s32 %v3381, %v3383
    %v3385 = vrot.slane %v3377, %v3384
    %v3387 = vunpack.c.l.s4 1983009808
    %v3388 = vunpack.c.0.s8 %v3387
    %v3389 = vlaneseq
    %v3390 = vshrl.u32 %v3389, 7
    %v3391 = vsub.s32 %v3388, %v3390
    %v3392 = vrot.slane %v3378, %v3391
    %v3393 = vcombine.low %v3385, %v3392
    %v3394 = vcombine.low %v3130, %v3131
    %v3395 = vcombine.low %v3132, %v3133
    %v3397 = vunpack.c.l.s4 1983009808
    %v3398 = vunpack.c.0.s8 %v3397
    %v3399 = vlaneseq
    %v3400 = vshrl.u32 %v3399, 7
    %v3401 = vsub.s32 %v3398, %v3400
    %v3402 = vrot.slane %v3394, %v3401
    %v3404 = vunpack.c.l.s4 1983009808
    %v3405 = vunpack.c.0.s8 %v3404
    %v3406 = vlaneseq
    %v3407 = vshrl.u32 %v3406, 7
    %v3408 = vsub.s32 %v3405, %v3407
    %v3409 = vrot.slane %v3395, %v3408
    %v3410 = vcombine.low %v3402, %v3409
    %v3411 = vcombine.low %v3134, %v3135
    %v3412 = vcombine.low %v3136, %v3137
    %v3414 = vunpack.c.l.s4 1983009808
    %v3415 = vunpack.c.0.s8 %v3414
    %v3416 = vlaneseq
    %v3417 = vshrl.u32 %v3416, 7
    %v3418 = vsub.s32 %v3415, %v3417
    %v3419 = vrot.slane %v3411, %v3418
    %v3421 = vunpack.c.l.s4 1983009808
    %v3422 = vunpack.c.0.s8 %v3421
    %v3423 = vlaneseq
    %v3424 = vshrl.u32 %v3423, 7
    %v3425 = vsub.s32 %v3422, %v3424
    %v3426 = vrot.slane %v3412, %v3425
    %v3427 = vcombine.low %v3419, %v3426
    %v3428 = vcombine.low %v3138, %v3139
    %v3429 = vcombine.low %v3140, %v3141
    %v3431 = vunpack.c.l.s4 1983009808
    %v3432 = vunpack.c.0.s8 %v3431
    %v3433 = vlaneseq
    %v3434 = vshrl.u32 %v3433, 7
    %v3435 = vsub.s32 %v3432, %v3434
    %v3436 = vrot.slane %v3428, %v3435
    %v3438 = vunpack.c.l.s4 1983009808
    %v3439 = vunpack.c.0.s8 %v3438
    %v3440 = vlaneseq
    %v3441 = vshrl.u32 %v3440, 7
    %v3442 = vsub.s32 %v3439, %v3441
    %v3443 = vrot.slane %v3429, %v3442
    %v3444 = vcombine.low %v3436, %v3443
    %v3445 = vcombine.low %v3142, %v3143
    %v3446 = vcombine.low %v3144, %v3145
    %v3448 = vunpack.c.l.s4 1983009808
    %v3449 = vunpack.c.0.s8 %v3448
    %v3450 = vlaneseq
    %v3451 = vshrl.u32 %v3450, 7
    %v3452 = vsub.s32 %v3449, %v3451
    %v3453 = vrot.slane %v3445, %v3452
    %v3455 = vunpack.c.l.s4 1983009808
    %v3456 = vunpack.c.0.s8 %v3455
    %v3457 = vlaneseq
    %v3458 = vshrl.u32 %v3457, 7
    %v3459 = vsub.s32 %v3456, %v3458
    %v3460 = vrot.slane %v3446, %v3459
    %v3461 = vcombine.low %v3453, %v3460
    %v3462 = vcombine.low %v3146, %v3147
    %v3463 = vcombine.low %v3148, %v3149
    %v3465 = vunpack.c.l.s4 1983009808
    %v3466 = vunpack.c.0.s8 %v3465
    %v3467 = vlaneseq
    %v3468 = vshrl.u32 %v3467, 7
    %v3469 = vsub.s32 %v3466, %v3468
    %v3470 = vrot.slane %v3462, %v3469
    %v3472 = vunpack.c.l.s4 1983009808
    %v3473 = vunpack.c.0.s8 %v3472
    %v3474 = vlaneseq
    %v3475 = vshrl.u32 %v3474, 7
    %v3476 = vsub.s32 %v3473, %v3475
    %v3477 = vrot.slane %v3463, %v3476
    %v3478 = vcombine.low %v3470, %v3477
    %v3479 = vcombine.low %v3150, %v3151
    %v3480 = vcombine.low %v3152, %v3153
    %v3482 = vunpack.c.l.s4 1983009808
    %v3483 = vunpack.c.0.s8 %v3482
    %v3484 = vlaneseq
    %v3485 = vshrl.u32 %v3484, 7
    %v3486 = vsub.s32 %v3483, %v3485
    %v3487 = vrot.slane %v3479, %v3486
    %v3489 = vunpack.c.l.s4 1983009808
    %v3490 = vunpack.c.0.s8 %v3489
    %v3491 = vlaneseq
    %v3492 = vshrl.u32 %v3491, 7
    %v3493 = vsub.s32 %v3490, %v3492
    %v3494 = vrot.slane %v3480, %v3493
    %v3495 = vcombine.low %v3487, %v3494
    %v3496 = vcombine.low %v3154, %v3155
    %v3497 = vcombine.low %v3156, %v3157
    %v3499 = vunpack.c.l.s4 1983009808
    %v3500 = vunpack.c.0.s8 %v3499
    %v3501 = vlaneseq
    %v3502 = vshrl.u32 %v3501, 7
    %v3503 = vsub.s32 %v3500, %v3502
    %v3504 = vrot.slane %v3496, %v3503
    %v3506 = vunpack.c.l.s4 1983009808
    %v3507 = vunpack.c.0.s8 %v3506
    %v3508 = vlaneseq
    %v3509 = vshrl.u32 %v3508, 7
    %v3510 = vsub.s32 %v3507, %v3509
    %v3511 = vrot.slane %v3497, %v3510
    %v3512 = vcombine.low %v3504, %v3511
    %v3513 = vcombine.low %v3158, %v3159
    %v3514 = vcombine.low %v3160, %v3161
    %v3516 = vunpack.c.l.s4 1983009808
    %v3517 = vunpack.c.0.s8 %v3516
    %v3518 = vlaneseq
    %v3519 = vshrl.u32 %v3518, 7
    %v3520 = vsub.s32 %v3517, %v3519
    %v3521 = vrot.slane %v3513, %v3520
    %v3523 = vunpack.c.l.s4 1983009808
    %v3524 = vunpack.c.0.s8 %v3523
    %v3525 = vlaneseq
    %v3526 = vshrl.u32 %v3525, 7
    %v3527 = vsub.s32 %v3524, %v3526
    %v3528 = vrot.slane %v3514, %v3527
    %v3529 = vcombine.low %v3521, %v3528
    %v3530 = vcombine.low %v3162, %v3163
    %v3531 = vcombine.low %v3164, %v3165
    %v3533 = vunpack.c.l.s4 1983009808
    %v3534 = vunpack.c.0.s8 %v3533
    %v3535 = vlaneseq
    %v3536 = vshrl.u32 %v3535, 7
    %v3537 = vsub.s32 %v3534, %v3536
    %v3538 = vrot.slane %v3530, %v3537
    %v3540 = vunpack.c.l.s4 1983009808
    %v3541 = vunpack.c.0.s8 %v3540
    %v3542 = vlaneseq
    %v3543 = vshrl.u32 %v3542, 7
    %v3544 = vsub.s32 %v3541, %v3543
    %v3545 = vrot.slane %v3531, %v3544
    %v3546 = vcombine.low %v3538, %v3545
    %v3547 = vcombine.low %v3166, %v3167
    %v3548 = vcombine.low %v3168, %v3169
    %v3550 = vunpack.c.l.s4 1983009808
    %v3551 = vunpack.c.0.s8 %v3550
    %v3552 = vlaneseq
    %v3553 = vshrl.u32 %v3552, 7
    %v3554 = vsub.s32 %v3551, %v3553
    %v3555 = vrot.slane %v3547, %v3554
    %v3557 = vunpack.c.l.s4 1983009808
    %v3558 = vunpack.c.0.s8 %v3557
    %v3559 = vlaneseq
    %v3560 = vshrl.u32 %v3559, 7
    %v3561 = vsub.s32 %v3558, %v3560
    %v3562 = vrot.slane %v3548, %v3561
    %v3563 = vcombine.low %v3555, %v3562
    %v3564 = vcombine.low %v3170, %v3171
    %v3565 = vcombine.low %v3172, %v3173
    %v3567 = vunpack.c.l.s4 1983009808
    %v3568 = vunpack.c.0.s8 %v3567
    %v3569 = vlaneseq
    %v3570 = vshrl.u32 %v3569, 7
    %v3571 = vsub.s32 %v3568, %v3570
    %v3572 = vrot.slane %v3564, %v3571
    %v3574 = vunpack.c.l.s4 1983009808
    %v3575 = vunpack.c.0.s8 %v3574
    %v3576 = vlaneseq
    %v3577 = vshrl.u32 %v3576, 7
    %v3578 = vsub.s32 %v3575, %v3577
    %v3579 = vrot.slane %v3565, %v3578
    %v3580 = vcombine.low %v3572, %v3579
    %v3581 = vcombine.low %v3174, %v3175
    %v3582 = vcombine.low %v3176, %v3177
    %v3584 = vunpack.c.l.s4 1983009808
    %v3585 = vunpack.c.0.s8 %v3584
    %v3586 = vlaneseq
    %v3587 = vshrl.u32 %v3586, 7
    %v3588 = vsub.s32 %v3585, %v3587
    %v3589 = vrot.slane %v3581, %v3588
    %v3591 = vunpack.c.l.s4 1983009808
    %v3592 = vunpack.c.0.s8 %v3591
    %v3593 = vlaneseq
    %v3594 = vshrl.u32 %v3593, 7
    %v3595 = vsub.s32 %v3592, %v3594
    %v3596 = vrot.slane %v3582, %v3595
    %v3597 = vcombine.low %v3589, %v3596
    %3618 = vst [vmem:[#allocation7] sm:$0xff] %v3274
    %3619 = vst [vmem:[#allocation7 + $0x8] sm:$0xff] %v3291
    %3620 = vst [vmem:[#allocation7 + $0x10] sm:$0xff] %v3308
    %3621 = vst [vmem:[#allocation7 + $0x18] sm:$0xff] %v3325
    %3622 = vst [vmem:[#allocation7 + $0x20] sm:$0xff] %v3342
    %3623 = vst [vmem:[#allocation7 + $0x28] sm:$0xff] %v3359
    %3624 = vst [vmem:[#allocation7 + $0x30] sm:$0xff] %v3376
    %3625 = vst [vmem:[#allocation7 + $0x38] sm:$0xff] %v3393
    %3626 = vst [vmem:[#allocation7 + $0x40] sm:$0xff] %v3410
    %3627 = vst [vmem:[#allocation7 + $0x48] sm:$0xff] %v3427
    %3628 = vst [vmem:[#allocation7 + $0x50] sm:$0xff] %v3444
    %3629 = vst [vmem:[#allocation7 + $0x58] sm:$0xff] %v3461
    %3630 = vst [vmem:[#allocation7 + $0x60] sm:$0xff] %v3478
    %3631 = vst [vmem:[#allocation7 + $0x68] sm:$0xff] %v3495
    %3632 = vst [vmem:[#allocation7 + $0x70] sm:$0xff] %v3512
    %3633 = vst [vmem:[#allocation7 + $0x78] sm:$0xff] %v3529
    %3634 = vst [vmem:[#allocation7 + $0x80] sm:$0xff] %v3546
    %3635 = vst [vmem:[#allocation7 + $0x88] sm:$0xff] %v3563
    %3636 = vst [vmem:[#allocation7 + $0x90] sm:$0xff] %v3580
    %3637 = vst [vmem:[#allocation7 + $0x98] sm:$0xff] %v3597
    // Predicated region
    $region22: #{predictions_upsampler_trainable.1} parent=1 // pred_check
      _
    $region23: #{predictions_upsampler_trainable.1} parent=1 // pred_check_branch
      %3639 = sbr.rel (0) target = $region25
    $region24: #{predictions_upsampler_trainable.1} parent=1 // pred_region
      %s3641 = ssub.s32 2560, 2560
      %3642 = vsyncadd [#allocation4], %s3641
      %s3644 = sshll.u32 [#allocation7], 4
      %s3645 = int_to_ptr.vmem [resolvable:$true] %s3644
      %3647 = dma.vmem_to_hbm [thread:$0]  %s3645, 2560, %s3, [#allocation4]
    $region25: #{predictions_upsampler_trainable.1} parent=1 // pred_fallthru
      _
    // Predicated region
    $region26: #{predictions_upsampler_trainable.1} parent=1 // pred_check
      _
    $region27: #{predictions_upsampler_trainable.1} parent=1 // pred_check_branch
      %3649 = sbr.rel (0) target = $region29
    $region28: #{predictions_upsampler_trainable.1} parent=1 // pred_region
      %3650 = dma.done [#allocation4], 2560
    $region29: #{predictions_upsampler_trainable.1} parent=1 // pred_fallthru
      _
    %3651 = vsyncpa [#allocation3], 1
    %3652 = vsyncpa [#allocation6], 1
    %3653 = vsyncpa [#allocation4], 1

</llo_original>
